<compile_context>
chip_gen: v7x
topology: tpu7x:2x2x1
jax: 0.10.0
libtpu: 0.0.40
codegen_flags: <defaults>
</compile_context>

<pallas_src>
import math
from functools import partial

import jax
import jax.numpy as jnp
from jax.experimental import pallas as pl
from jax.experimental.pallas import tpu as pltpu


def _round_up(x, m):
    return (x + m - 1) // m * m


def _chip_tuning():
    """Generation-specific VMEM limit / slab sizing.

    v7x: 64 MiB VMEM per TC, 2 TCs  -> leave DMA/scratch headroom, grid >= 2.
    v5e/v6e: 128 MiB VMEM, 1 TC     -> bigger slabs, serial grid is fine.
    Falls back to conservative values if the hardware query is unavailable.
    """
    try:
        vmem_phys = int(pltpu.get_tpu_info().vmem_capacity_bytes)
    except Exception:
        # Conservative defaults that are safe on every generation.
        return dict(vmem_limit=48 * 1024 * 1024, target_m=512, multi_core=True)
    if vmem_phys <= 80 * 1024 * 1024:            # v7x-class (64 MiB / TC)
        return dict(vmem_limit=max(vmem_phys - 12 * 1024 * 1024, 32 * 1024 * 1024),
                    target_m=512, multi_core=True)
    # v5e / v6e class (128 MiB, single TensorCore)
    return dict(vmem_limit=min(vmem_phys - 24 * 1024 * 1024, 104 * 1024 * 1024),
                target_m=1024, multi_core=False)


def _pick_bblk(batch, t_pad, *, target_m, multi_core):
    """Batch elements per grid step (M = b_blk * t_pad ~ target_m).
    Only keep the grid >= 2 on multi-TensorCore chips (v7x)."""
    want = max(1, target_m // max(t_pad, 1))
    if multi_core and batch >= 2:
        want = min(want, batch // 2)
    want = max(1, min(want, batch))
    for d in range(want, 0, -1):
        if batch % d == 0:
            return d
    return 1


def _const_spec(shape):
    """Full-array BlockSpec with a constant index map, single-buffered."""
    idx = lambda b: (0,) * len(shape)
    try:
        return pl.BlockSpec(shape, idx, pipeline_mode=pl.Buffered(1))
    except Exception:   # older jax without pipeline_mode kwarg
        return pl.BlockSpec(shape, idx)


# ----------------------------------------------------------------------------
# Kernels
# ----------------------------------------------------------------------------
def _layer_norm(x, gamma):
    mu = jnp.mean(x, axis=-1, keepdims=True)
    var = jnp.mean((x - mu) ** 2, axis=-1, keepdims=True)
    return (x - mu) * jax.lax.rsqrt(var + 1e-5) * gamma


def _embed_kernel(p_ref, w_ref, base_ref, o_ref):
    # p_ref:   (b_grp, t_pad, K) bf16  -- row 0 and pad rows are zeros
    # w_ref:   (K, E) bf16             -- flattened conv weight
    # base_ref:(t_pad, E) f32          -- [cls+pos0 ; pos_i + conv_b ; zeros]
    # o_ref:   (b_grp, t_pad, E) f32
    bg, tp, K = p_ref.shape
    E = w_ref.shape[1]
    emb = jnp.dot(p_ref[...].reshape(bg * tp, K), w_ref[...],
                  preferred_element_type=jnp.float32)
    # Single aligned full-tile store (CLS / pos / bias fused via `base`).
    o_ref[...] = (emb.reshape(bg, tp, E) + base_ref[...]).astype(o_ref.dtype)


def _encoder_block_kernel(x_ref, ln1_ref, wq_ref, wk_ref, wv_ref, wo_ref,
                          ln2_ref, w1_ref, w2_ref, o_ref,
                          *, n_head, h_size, n_tok, b_blk, t_pad, tk_pad):
    E = x_ref.shape[-1]
    M = b_blk * t_pad
    x = x_ref[...].astype(jnp.float32).reshape(M, E)      # f32 residual stream

    # ---------------- ResMHAtten: pre-LN multi-head attention + residual ----
    hb = _layer_norm(x, ln1_ref[...]).astype(jnp.bfloat16)
    # NOTE: 1/sqrt(h_size) is folded into wq at init time (no VPU pass here).
    q = jnp.dot(hb, wq_ref[...], preferred_element_type=jnp.float32).astype(jnp.bfloat16)
    k = jnp.dot(hb, wk_ref[...], preferred_element_type=jnp.float32).astype(jnp.bfloat16)
    v = jnp.dot(hb, wv_ref[...], preferred_element_type=jnp.float32).astype(jnp.bfloat16)
    wo = wo_ref[...]

    # Key-padding mask (padded tokens never attended to), hoisted out of loop.
    if tk_pad > n_tok:
        col = jax.lax.broadcasted_iota(jnp.int32, (1, 1, tk_pad), 2)
        key_ok = col < n_tok
    else:
        key_ok = None
    n_kpad = tk_pad - t_pad
    kv_pad = (jnp.zeros((b_blk, n_kpad, h_size), jnp.bfloat16)
              if n_kpad > 0 else None)

    # Per head: one b_blk-batched QK^T and one P.V (single dot_general each);
    # the output projection is accumulated from a sublane slice of Wo so the
    # merged attention tensor is never materialized (no stack / concat).
    for hd in range(n_head):
        sl = slice(hd * h_size, (hd + 1) * h_size)
        qh = q[:, sl].reshape(b_blk, t_pad, h_size)
        kh = k[:, sl].reshape(b_blk, t_pad, h_size)
        vh = v[:, sl].reshape(b_blk, t_pad, h_size)
        if kv_pad is not None:                       # lane-align keys to 128
            kh = jnp.concatenate([kh, kv_pad], axis=1)
            vh = jnp.concatenate([vh, kv_pad], axis=1)
        s = jnp.einsum('bqd,bkd->bqk', qh, kh,
                       preferred_element_type=jnp.float32)       # (b,tq,tk_pad)
        if key_ok is not None:
            s = jnp.where(key_ok, s, -1e30)
        s = s - jnp.max(s, axis=-1, keepdims=True)
        p = jnp.exp(s)
        p = p * pl.reciprocal(jnp.sum(p, axis=-1, keepdims=True), approx=True)
        ah = jnp.einsum('bqk,bkd->bqd', p.astype(jnp.bfloat16), vh,
                        preferred_element_type=jnp.float32)      # (b,tq,hs)
        x = x + jnp.dot(ah.reshape(M, h_size).astype(jnp.bfloat16), wo[sl, :],
                        preferred_element_type=jnp.float32)

    # ---------------- ResFFNet: pre-LN feed-forward + residual --------------
    h2 = _layer_norm(x, ln2_ref[...]).astype(jnp.bfloat16)
    ff = jnp.dot(h2, w1_ref[...], preferred_element_type=jnp.float32)
    # TODO(synk): ResFFNet internals not shipped; tanh-GELU (EUP-friendly) assumed.
    ff = jax.nn.gelu(ff, approximate=True)
    x = x + jnp.dot(ff.astype(jnp.bfloat16), w2_ref[...],
                    preferred_element_type=jnp.float32)

    o_ref[...] = x.reshape(b_blk, t_pad, E).astype(o_ref.dtype)


# ----------------------------------------------------------------------------
# Wrappers
# ----------------------------------------------------------------------------
def _embed(patches_ext, conv_w, base, *, b_grp, vmem_limit):
    B, t_pad, K = patches_ext.shape
    E = conv_w.shape[1]
    flops = 2 * B * t_pad * K * E
    bytes_acc = (patches_ext.size * 2 + conv_w.size * 2
                 + base.size * 4 + B * t_pad * E * 4)
    return pl.pallas_call(
        _embed_kernel,
        out_shape=jax.ShapeDtypeStruct((B, t_pad, E), jnp.float32),
        grid_spec=pltpu.PrefetchScalarGridSpec(
            num_scalar_prefetch=0,
            grid=(B // b_grp,),
            in_specs=[
                pl.BlockSpec((b_grp, t_pad, K), lambda b: (b, 0, 0)),
                _const_spec((K, E)),
                _const_spec((t_pad, E)),
            ],
            out_specs=pl.BlockSpec((b_grp, t_pad, E), lambda b: (b, 0, 0)),
        ),
        compiler_params=pltpu.CompilerParams(
            dimension_semantics=("parallel",),
            vmem_limit_bytes=vmem_limit,
        ),
        cost_estimate=pl.CostEstimate(flops=int(flops), transcendentals=0,
                                      bytes_accessed=int(bytes_acc)),
    )(patches_ext, conv_w, base)


def _encoder_block(x, blk, *, n_head, h_size, n_tok, b_blk, vmem_limit):
    B, Tp, E = x.shape
    tk_pad = _round_up(Tp, 128)      # lane-aligned key/score width
    hidden = blk['w1'].shape[1]
    M = B * Tp
    flops = (8 * M * E * E + 4 * M * E * hidden + 4 * M * tk_pad * E)
    transc = M * tk_pad + M * hidden
    bytes_acc = (2 * M * E * 4 + (4 * E * E + 2 * E * hidden) * 2 + 4 * E * 4)

    kernel = partial(_encoder_block_kernel, n_head=n_head, h_size=h_size,
                     n_tok=n_tok, b_blk=b_blk, t_pad=Tp, tk_pad=tk_pad)
    return pl.pallas_call(
        kernel,
        out_shape=jax.ShapeDtypeStruct((B, Tp, E), x.dtype),
        grid_spec=pltpu.PrefetchScalarGridSpec(
            num_scalar_prefetch=0,
            grid=(B // b_blk,),
            in_specs=[
                pl.BlockSpec((b_blk, Tp, E), lambda b: (b, 0, 0)),
                _const_spec(blk['ln1_g'].shape),
                _const_spec(blk['wq'].shape),
                _const_spec(blk['wk'].shape),
                _const_spec(blk['wv'].shape),
                _const_spec(blk['wo'].shape),
                _const_spec(blk['ln2_g'].shape),
                _const_spec(blk['w1'].shape),
                _const_spec(blk['w2'].shape),
            ],
            out_specs=pl.BlockSpec((b_blk, Tp, E), lambda b: (b, 0, 0)),
        ),
        compiler_params=pltpu.CompilerParams(
            dimension_semantics=("parallel",),
            vmem_limit_bytes=vmem_limit,
        ),
        cost_estimate=pl.CostEstimate(flops=int(flops), transcendentals=int(transc),
                                      bytes_accessed=int(bytes_acc)),
    )(x, blk['ln1_g'], blk['wq'], blk['wk'], blk['wv'], blk['wo'],
      blk['ln2_g'], blk['w1'], blk['w2'])


def encoder_forward(img, params, *, p_size, n_head, h_size):
    B, C, H, W = img.shape
    gh, gw = H // p_size, W // p_size
    P = gh * gw
    K = C * p_size * p_size
    E = params['conv_w'].shape[1]
    T = P + 1
    t_pad = _round_up(T, 8)

    cfg = _chip_tuning()
    b_blk = _pick_bblk(B, t_pad, target_m=cfg['target_m'],
                       multi_core=cfg['multi_core'])

    # Patchify glue: (B,C,H,W) -> (B,P,K); patch order row-major over the
    # spatial grid, within-patch order (c,dh,dw)  (== conv(x).flatten(2).transpose(1,2)).
    # bf16 feed: the embed pass is memory-bound (halves input DMA).
    patches = img.reshape(B, C, gh, p_size, gw, p_size)
    patches = patches.transpose(0, 2, 4, 1, 3, 5).reshape(B, P, K).astype(jnp.bfloat16)
    # Pre-pad to t_pad rows (zero CLS-row on top, zero tail) so the embed
    # kernel emits a single aligned full-tile store.
    patches_ext = jnp.concatenate(
        [jnp.zeros((B, 1, K), jnp.bfloat16), patches,
         jnp.zeros((B, t_pad - T, K), jnp.bfloat16)], axis=1)

    # base: row0 = cls + pos0 (no conv bias), rows 1..P = pos_i + conv_b,
    # pad rows = 0.  CLS prepend + positional encoding + conv bias fused.
    pos = params['ppe'][0]                                     # (T, E)
    base = jnp.concatenate([
        params['cls'][0] + pos[:1],
        pos[1:] + params['conv_b'],
        jnp.zeros((t_pad - T, E), jnp.float32)], axis=0)       # (t_pad, E)

    x = _embed(patches_ext, params['conv_w'], base,
               b_grp=b_blk, vmem_limit=cfg['vmem_limit'])

    # Dropout with d_rate=0.0 is the identity (module default) — skipped.
    for blk in params['blocks']:
        x = _encoder_block(x, blk, n_head=n_head, h_size=h_size, n_tok=T,
                           b_blk=b_blk, vmem_limit=cfg['vmem_limit'])
    return x[:, :T, :]


# ----------------------------------------------------------------------------
# Deterministic parameter init (mirrors Encoder._init_weights: std=0.02,
# zero biases, c_proj std = 0.02/sqrt(2*n_block), LayerNorm gamma=1, bias=False).
# Matmul weights stored in bf16; 1/sqrt(h_size) folded into wq.
# ----------------------------------------------------------------------------
def init_encoder_params(key, *, n_block, n_emb, n_head, h_size, p_size, c_dim,
                        n_patch, exp_fac):
    std = 0.02
    cstd = 0.02 / math.sqrt(2 * n_block)
    E = n_emb
    K = c_dim * p_size * p_size
    keys = iter(jax.random.split(key, 3 + n_block * 6))

    def nrm(k, shape, s, dtype, extra=1.0):
        return (jax.random.normal(k, shape, jnp.float32) * s * extra).astype(dtype)

    params = {
        'conv_w': nrm(next(keys), (K, E), std, jnp.bfloat16),
        'conv_b': jnp.zeros((1, E), jnp.float32),
        'cls': nrm(next(keys), (1, 1, E), std, jnp.float32),
        'ppe': nrm(next(keys), (1, n_patch + 1, E), std, jnp.float32),
        'blocks': [],
    }
    q_scale = 1.0 / math.sqrt(h_size)       # attention scale folded into wq
    for _ in range(n_block):
        params['blocks'].append({
            'ln1_g': jnp.ones((1, E), jnp.float32),
            'wq': nrm(next(keys), (E, n_head * h_size), std, jnp.bfloat16, q_scale),
            'wk': nrm(next(keys), (E, n_head * h_size), std, jnp.bfloat16),
            'wv': nrm(next(keys), (E, n_head * h_size), std, jnp.bfloat16),
            'wo': nrm(next(keys), (n_head * h_size, E), cstd, jnp.bfloat16),
            'ln2_g': jnp.ones((1, E), jnp.float32),
            'w1': nrm(next(keys), (E, exp_fac * E), std, jnp.bfloat16),
            'w2': nrm(next(keys), (exp_fac * E, E), cstd, jnp.bfloat16),
        })
    return params


# ----------------------------------------------------------------------------
if __name__ == "__main__":
    # Small config consistent with the module: n_head * h_size == n_emb
    n_block, n_emb, n_head, h_size = 2, 32, 4, 8
    p_size, im_size, c_dim, exp_fac = 4, 16, 4, 4
    B = 2
    n_patch = im_size ** 2 // p_size ** 2       # 16  -> T = 17

    key = jax.random.PRNGKey(0)
    k_img, k_par = jax.random.split(key)
    img = jax.random.normal(k_img, (B, c_dim, im_size, im_size), jnp.float32)

    params = init_encoder_params(
        k_par, n_block=n_block, n_emb=n_emb, n_head=n_head, h_size=h_size,
        p_size=p_size, c_dim=c_dim, n_patch=n_patch, exp_fac=exp_fac)

    fwd = jax.jit(partial(encoder_forward, p_size=p_size, n_head=n_head,
                          h_size=h_size))
    out = fwd(img, params)
    jax.block_until_ready(out)

    assert out.shape == (B, n_patch + 1, n_emb), out.shape
    assert bool(jnp.all(jnp.isfinite(out)))
    # TODO(synk): BIAConv2DEmbedding/ResMHAtten/ResFFNet sources are not shipped;
    # standard GPT-style pre-LN residual semantics assumed.
    print("KERNEL_OK")
</pallas_src>

<mosaic_0001>
module attributes {stable_mosaic.version = 11 : i64} {
  func.func @_embed_kernel(%arg0: i32, %arg1: memref<1x24x64xbf16, #tpu.memory_space<vmem>>, %arg2: memref<64x32xbf16, #tpu.memory_space<vmem>>, %arg3: memref<24x32xf32, #tpu.memory_space<vmem>>, %arg4: memref<1x24x32xf32, #tpu.memory_space<vmem>>) attributes {dimension_semantics = [#tpu.dimension_semantics<parallel>], iteration_bounds = array<i64: 2>, scalar_prefetch = 0 : i64, scratch_operands = 0 : i64, tpu.core_type = #tpu.core_type<tc>, window_params = [{transform_indices = @transform_0, window_bounds = array<i64: 1, 24, 64>}, {pipeline_mode = #tpu.pipeline_mode<synchronous>, transform_indices = @transform_1, window_bounds = array<i64: 64, 32>}, {pipeline_mode = #tpu.pipeline_mode<synchronous>, transform_indices = @transform_2, window_bounds = array<i64: 24, 32>}, {transform_indices = @transform_3, window_bounds = array<i64: 1, 24, 32>}]} {
    %c0 = arith.constant 0 : index
    %c0_0 = arith.constant 0 : index
    %c0_1 = arith.constant 0 : index
    %0 = vector.load %arg1[%c0, %c0_0, %c0_1] : memref<1x24x64xbf16, #tpu.memory_space<vmem>>, vector<1x24x64xbf16>
    %1 = vector.shape_cast %0 : vector<1x24x64xbf16> to vector<24x64xbf16>
    %c0_2 = arith.constant 0 : index
    %c0_3 = arith.constant 0 : index
    %2 = vector.load %arg2[%c0_2, %c0_3] : memref<64x32xbf16, #tpu.memory_space<vmem>>, vector<64x32xbf16>
    %cst = arith.constant dense<0.000000e+00> : vector<24x32xf32>
    %3 = tpu.matmul %1, %2, %cst {dimension_numbers = #tpu.dot_dimension_numbers<[1], [0], [0], [1], [0, 0, 1, 1], [], []>} : vector<24x64xbf16>, vector<64x32xbf16>, vector<24x32xf32> -> vector<24x32xf32>
    %4 = vector.shape_cast %3 : vector<24x32xf32> to vector<1x24x32xf32>
    %c0_4 = arith.constant 0 : index
    %c0_5 = arith.constant 0 : index
    %5 = vector.load %arg3[%c0_4, %c0_5] : memref<24x32xf32, #tpu.memory_space<vmem>>, vector<24x32xf32>
    %6 = vector.shape_cast %5 : vector<24x32xf32> to vector<1x24x32xf32>
    %7 = arith.addf %4, %6 : vector<1x24x32xf32>
    %c0_6 = arith.constant 0 : index
    %c0_7 = arith.constant 0 : index
    %c0_8 = arith.constant 0 : index
    %8 = vector.load %arg4[%c0_6, %c0_7, %c0_8] : memref<1x24x32xf32, #tpu.memory_space<vmem>>, vector<1x24x32xf32>
    tpu.vector_store %arg4[%c0_6, %c0_7, %c0_8], %7 {strides = array<i32>} : memref<1x24x32xf32, #tpu.memory_space<vmem>>, vector<1x24x32xf32>,
    return
  }
  func.func @transform_0(%arg0: i32) -> (i32, i32, i32) {
    %c0_i32 = arith.constant 0 : i32
    %c0_i32_0 = arith.constant 0 : i32
    %c0_i32_1 = arith.constant 0 : i32
    return %arg0, %c0_i32, %c0_i32_0 : i32, i32, i32
  }
  func.func @transform_1(%arg0: i32) -> (i32, i32) {
    %c0_i32 = arith.constant 0 : i32
    %c0_i32_0 = arith.constant 0 : i32
    %c0_i32_1 = arith.constant 0 : i32
    return %c0_i32, %c0_i32_0 : i32, i32
  }
  func.func @transform_2(%arg0: i32) -> (i32, i32) {
    %c0_i32 = arith.constant 0 : i32
    %c0_i32_0 = arith.constant 0 : i32
    %c0_i32_1 = arith.constant 0 : i32
    return %c0_i32, %c0_i32_0 : i32, i32
  }
  func.func @transform_3(%arg0: i32) -> (i32, i32, i32) {
    %c0_i32 = arith.constant 0 : i32
    %c0_i32_0 = arith.constant 0 : i32
    %c0_i32_1 = arith.constant 0 : i32
    return %arg0, %c0_i32, %c0_i32_0 : i32, i32, i32
  }
}

module attributes {stable_mosaic.version = 11 : i64} {
  func.func @_encoder_block_kernel(%arg0: i32, %arg1: memref<1x24x32xf32, #tpu.memory_space<vmem>>, %arg2: memref<1x32xf32, #tpu.memory_space<vmem>>, %arg3: memref<32x32xbf16, #tpu.memory_space<vmem>>, %arg4: memref<32x32xbf16, #tpu.memory_space<vmem>>, %arg5: memref<32x32xbf16, #tpu.memory_space<vmem>>, %arg6: memref<32x32xbf16, #tpu.memory_space<vmem>>, %arg7: memref<1x32xf32, #tpu.memory_space<vmem>>, %arg8: memref<32x128xbf16, #tpu.memory_space<vmem>>, %arg9: memref<128x32xbf16, #tpu.memory_space<vmem>>, %arg10: memref<1x24x32xf32, #tpu.memory_space<vmem>>) attributes {dimension_semantics = [#tpu.dimension_semantics<parallel>], iteration_bounds = array<i64: 2>, scalar_prefetch = 0 : i64, scratch_operands = 0 : i64, tpu.core_type = #tpu.core_type<tc>, window_params = [{transform_indices = @transform_0, window_bounds = array<i64: 1, 24, 32>}, {pipeline_mode = #tpu.pipeline_mode<synchronous>, transform_indices = @transform_1, window_bounds = array<i64: 1, 32>}, {pipeline_mode = #tpu.pipeline_mode<synchronous>, transform_indices = @transform_2, window_bounds = array<i64: 32, 32>}, {pipeline_mode = #tpu.pipeline_mode<synchronous>, transform_indices = @transform_3, window_bounds = array<i64: 32, 32>}, {pipeline_mode = #tpu.pipeline_mode<synchronous>, transform_indices = @transform_4, window_bounds = array<i64: 32, 32>}, {pipeline_mode = #tpu.pipeline_mode<synchronous>, transform_indices = @transform_5, window_bounds = array<i64: 32, 32>}, {pipeline_mode = #tpu.pipeline_mode<synchronous>, transform_indices = @transform_6, window_bounds = array<i64: 1, 32>}, {pipeline_mode = #tpu.pipeline_mode<synchronous>, transform_indices = @transform_7, window_bounds = array<i64: 32, 128>}, {pipeline_mode = #tpu.pipeline_mode<synchronous>, transform_indices = @transform_8, window_bounds = array<i64: 128, 32>}, {transform_indices = @transform_9, window_bounds = array<i64: 1, 24, 32>}]} {
    %c0 = arith.constant 0 : index
    %c0_0 = arith.constant 0 : index
    %c0_1 = arith.constant 0 : index
    %0 = vector.load %arg1[%c0, %c0_0, %c0_1] : memref<1x24x32xf32, #tpu.memory_space<vmem>>, vector<1x24x32xf32>
    %1 = vector.shape_cast %0 : vector<1x24x32xf32> to vector<24x32xf32>
    %c0_2 = arith.constant 0 : index
    %c0_3 = arith.constant 0 : index
    %2 = vector.load %arg2[%c0_2, %c0_3] : memref<1x32xf32, #tpu.memory_space<vmem>>, vector<1x32xf32>
    %cst = arith.constant dense<0.000000e+00> : vector<24xf32>
    %3 = vector.multi_reduction <add>, %1, %cst [1] : vector<24x32xf32> to vector<24xf32>
    %4 = vector.shape_cast %3 : vector<24xf32> to vector<24x1xf32>
    %cst_4 = arith.constant 3.200000e+01 : f32
    %5 = vector.broadcast %cst_4 : f32 to vector<24x1xf32>
    %6 = arith.divf %4, %5 : vector<24x1xf32>
    %7 = vector.broadcast %6 : vector<24x1xf32> to vector<24x32xf32>
    %8 = arith.subf %1, %7 : vector<24x32xf32>
    %9 = arith.mulf %8, %8 : vector<24x32xf32>
    %cst_5 = arith.constant dense<0.000000e+00> : vector<24xf32>
    %10 = vector.multi_reduction <add>, %9, %cst_5 [1] : vector<24x32xf32> to vector<24xf32>
    %11 = vector.shape_cast %10 : vector<24xf32> to vector<24x1xf32>
    %cst_6 = arith.constant 3.200000e+01 : f32
    %12 = vector.broadcast %cst_6 : f32 to vector<24x1xf32>
    %13 = arith.divf %11, %12 : vector<24x1xf32>
    %14 = vector.broadcast %6 : vector<24x1xf32> to vector<24x32xf32>
    %15 = arith.subf %1, %14 : vector<24x32xf32>
    %cst_7 = arith.constant 9.99999974E-6 : f32
    %16 = vector.broadcast %cst_7 : f32 to vector<24x1xf32>
    %17 = arith.addf %13, %16 : vector<24x1xf32>
    %18 = math.rsqrt %17 : vector<24x1xf32>
    %19 = vector.broadcast %18 : vector<24x1xf32> to vector<24x32xf32>
    %20 = arith.mulf %15, %19 : vector<24x32xf32>
    %21 = vector.broadcast %2 : vector<1x32xf32> to vector<24x32xf32>
    %22 = arith.mulf %20, %21 : vector<24x32xf32>
    %23 = arith.truncf %22 : vector<24x32xf32> to vector<24x32xbf16>
    %c0_8 = arith.constant 0 : index
    %c0_9 = arith.constant 0 : index
    %24 = vector.load %arg3[%c0_8, %c0_9] : memref<32x32xbf16, #tpu.memory_space<vmem>>, vector<32x32xbf16>
    %cst_10 = arith.constant dense<0.000000e+00> : vector<24x32xf32>
    %25 = tpu.matmul %23, %24, %cst_10 {dimension_numbers = #tpu.dot_dimension_numbers<[1], [0], [0], [1], [0, 0, 1, 1], [], []>} : vector<24x32xbf16>, vector<32x32xbf16>, vector<24x32xf32> -> vector<24x32xf32>
    %26 = arith.truncf %25 : vector<24x32xf32> to vector<24x32xbf16>
    %c0_11 = arith.constant 0 : index
    %c0_12 = arith.constant 0 : index
    %27 = vector.load %arg4[%c0_11, %c0_12] : memref<32x32xbf16, #tpu.memory_space<vmem>>, vector<32x32xbf16>
    %cst_13 = arith.constant dense<0.000000e+00> : vector<24x32xf32>
    %28 = tpu.matmul %23, %27, %cst_13 {dimension_numbers = #tpu.dot_dimension_numbers<[1], [0], [0], [1], [0, 0, 1, 1], [], []>} : vector<24x32xbf16>, vector<32x32xbf16>, vector<24x32xf32> -> vector<24x32xf32>
    %29 = arith.truncf %28 : vector<24x32xf32> to vector<24x32xbf16>
    %c0_14 = arith.constant 0 : index
    %c0_15 = arith.constant 0 : index
    %30 = vector.load %arg5[%c0_14, %c0_15] : memref<32x32xbf16, #tpu.memory_space<vmem>>, vector<32x32xbf16>
    %cst_16 = arith.constant dense<0.000000e+00> : vector<24x32xf32>
    %31 = tpu.matmul %23, %30, %cst_16 {dimension_numbers = #tpu.dot_dimension_numbers<[1], [0], [0], [1], [0, 0, 1, 1], [], []>} : vector<24x32xbf16>, vector<32x32xbf16>, vector<24x32xf32> -> vector<24x32xf32>
    %32 = arith.truncf %31 : vector<24x32xf32> to vector<24x32xbf16>
    %c0_17 = arith.constant 0 : index
    %c0_18 = arith.constant 0 : index
    %33 = vector.load %arg6[%c0_17, %c0_18] : memref<32x32xbf16, #tpu.memory_space<vmem>>, vector<32x32xbf16>
    %34 = tpu.iota {dimensions = array<i32: 2>} : vector<1x1x128xi32>
    %c17_i32 = arith.constant 17 : i32
    %35 = vector.broadcast %c17_i32 : i32 to vector<1x1x128xi32>
    %36 = arith.cmpi slt, %34, %35 : vector<1x1x128xi32>
    %cst_19 = arith.constant 0.000000e+00 : bf16
    %37 = vector.broadcast %cst_19 : bf16 to vector<1x104x8xbf16>
    %38 = vector.extract_strided_slice %26 {offsets = [0, 0], sizes = [24, 8], strides = [1, 1]} : vector<24x32xbf16> to vector<24x8xbf16>
    %39 = vector.shape_cast %38 : vector<24x8xbf16> to vector<1x24x8xbf16>
    %40 = vector.extract_strided_slice %29 {offsets = [0, 0], sizes = [24, 8], strides = [1, 1]} : vector<24x32xbf16> to vector<24x8xbf16>
    %41 = vector.shape_cast %40 : vector<24x8xbf16> to vector<1x24x8xbf16>
    %42 = vector.extract_strided_slice %32 {offsets = [0, 0], sizes = [24, 8], strides = [1, 1]} : vector<24x32xbf16> to vector<24x8xbf16>
    %43 = vector.shape_cast %42 : vector<24x8xbf16> to vector<1x24x8xbf16>
    %44 = tpu.concatenate %41, %37 in 1 : vector<1x24x8xbf16>, vector<1x104x8xbf16> -> vector<1x128x8xbf16>
    %45 = tpu.concatenate %43, %37 in 1 : vector<1x24x8xbf16>, vector<1x104x8xbf16> -> vector<1x128x8xbf16>
    "tpu.trace_start"() <{level = 10 : i32, message = "bqd,bkd->bqk"}> : () -> ()
    %cst_20 = arith.constant dense<0.000000e+00> : vector<1x24x128xf32>
    %46 = tpu.matmul %39, %44, %cst_20 {dimension_numbers = #tpu.dot_dimension_numbers<[2], [2], [1], [1], [0, 0, 0, 1, 1, 1], [0], [0]>} : vector<1x24x8xbf16>, vector<1x128x8xbf16>, vector<1x24x128xf32> -> vector<1x24x128xf32>
    %cst_21 = arith.constant -1.000000e+30 : f32
    "tpu.trace_stop"() : () -> ()
    %47 = vector.shape_cast %36 : vector<1x1x128xi1> to vector<1x1x128xi1>
    %48 = vector.broadcast %47 : vector<1x1x128xi1> to vector<1x24x128xi1>
    %49 = vector.broadcast %cst_21 : f32 to vector<1x24x128xf32>
    %50 = arith.select %48, %46, %49 : vector<1x24x128xi1>, vector<1x24x128xf32>
    %cst_22 = arith.constant dense<0xFF800000> : vector<1x24xf32>
    %51 = vector.multi_reduction <maximumf>, %50, %cst_22 [2] : vector<1x24x128xf32> to vector<1x24xf32>
    %52 = vector.shape_cast %51 : vector<1x24xf32> to vector<1x24x1xf32>
    %53 = vector.broadcast %52 : vector<1x24x1xf32> to vector<1x24x128xf32>
    %54 = arith.subf %50, %53 : vector<1x24x128xf32>
    %55 = math.exp %54 : vector<1x24x128xf32>
    %cst_23 = arith.constant dense<0.000000e+00> : vector<1x24xf32>
    %56 = vector.multi_reduction <add>, %55, %cst_23 [2] : vector<1x24x128xf32> to vector<1x24xf32>
    %57 = vector.shape_cast %56 : vector<1x24xf32> to vector<1x24x1xf32>
    %58 = tpu.reciprocal %57 {approx = true} : vector<1x24x1xf32> -> vector<1x24x1xf32>
    %59 = vector.broadcast %58 : vector<1x24x1xf32> to vector<1x24x128xf32>
    %60 = arith.mulf %55, %59 : vector<1x24x128xf32>
    %61 = arith.truncf %60 : vector<1x24x128xf32> to vector<1x24x128xbf16>
    "tpu.trace_start"() <{level = 10 : i32, message = "bqk,bkd->bqd"}> : () -> ()
    %cst_24 = arith.constant dense<0.000000e+00> : vector<1x24x8xf32>
    %62 = tpu.matmul %61, %45, %cst_24 {dimension_numbers = #tpu.dot_dimension_numbers<[2], [1], [1], [2], [0, 0, 0, 1, 1, 2], [0], [0]>} : vector<1x24x128xbf16>, vector<1x128x8xbf16>, vector<1x24x8xf32> -> vector<1x24x8xf32>
    "tpu.trace_stop"() : () -> ()
    %63 = vector.shape_cast %62 : vector<1x24x8xf32> to vector<24x8xf32>
    %64 = arith.truncf %63 : vector<24x8xf32> to vector<24x8xbf16>
    %65 = vector.extract_strided_slice %33 {offsets = [0, 0], sizes = [8, 32], strides = [1, 1]} : vector<32x32xbf16> to vector<8x32xbf16>
    %cst_25 = arith.constant dense<0.000000e+00> : vector<24x32xf32>
    %66 = tpu.matmul %64, %65, %cst_25 {dimension_numbers = #tpu.dot_dimension_numbers<[1], [0], [0], [1], [0, 0, 1, 1], [], []>} : vector<24x8xbf16>, vector<8x32xbf16>, vector<24x32xf32> -> vector<24x32xf32>
    %67 = arith.addf %1, %66 : vector<24x32xf32>
    %68 = vector.extract_strided_slice %26 {offsets = [0, 8], sizes = [24, 8], strides = [1, 1]} : vector<24x32xbf16> to vector<24x8xbf16>
    %69 = vector.shape_cast %68 : vector<24x8xbf16> to vector<1x24x8xbf16>
    %70 = vector.extract_strided_slice %29 {offsets = [0, 8], sizes = [24, 8], strides = [1, 1]} : vector<24x32xbf16> to vector<24x8xbf16>
    %71 = vector.shape_cast %70 : vector<24x8xbf16> to vector<1x24x8xbf16>
    %72 = vector.extract_strided_slice %32 {offsets = [0, 8], sizes = [24, 8], strides = [1, 1]} : vector<24x32xbf16> to vector<24x8xbf16>
    %73 = vector.shape_cast %72 : vector<24x8xbf16> to vector<1x24x8xbf16>
    %74 = tpu.concatenate %71, %37 in 1 : vector<1x24x8xbf16>, vector<1x104x8xbf16> -> vector<1x128x8xbf16>
    %75 = tpu.concatenate %73, %37 in 1 : vector<1x24x8xbf16>, vector<1x104x8xbf16> -> vector<1x128x8xbf16>
    "tpu.trace_start"() <{level = 10 : i32, message = "bqd,bkd->bqk"}> : () -> ()
    %cst_26 = arith.constant dense<0.000000e+00> : vector<1x24x128xf32>
    %76 = tpu.matmul %69, %74, %cst_26 {dimension_numbers = #tpu.dot_dimension_numbers<[2], [2], [1], [1], [0, 0, 0, 1, 1, 1], [0], [0]>} : vector<1x24x8xbf16>, vector<1x128x8xbf16>, vector<1x24x128xf32> -> vector<1x24x128xf32>
    %cst_27 = arith.constant -1.000000e+30 : f32
    "tpu.trace_stop"() : () -> ()
    %77 = vector.shape_cast %36 : vector<1x1x128xi1> to vector<1x1x128xi1>
    %78 = vector.broadcast %77 : vector<1x1x128xi1> to vector<1x24x128xi1>
    %79 = vector.broadcast %cst_27 : f32 to vector<1x24x128xf32>
    %80 = arith.select %78, %76, %79 : vector<1x24x128xi1>, vector<1x24x128xf32>
    %cst_28 = arith.constant dense<0xFF800000> : vector<1x24xf32>
    %81 = vector.multi_reduction <maximumf>, %80, %cst_28 [2] : vector<1x24x128xf32> to vector<1x24xf32>
    %82 = vector.shape_cast %81 : vector<1x24xf32> to vector<1x24x1xf32>
    %83 = vector.broadcast %82 : vector<1x24x1xf32> to vector<1x24x128xf32>
    %84 = arith.subf %80, %83 : vector<1x24x128xf32>
    %85 = math.exp %84 : vector<1x24x128xf32>
    %cst_29 = arith.constant dense<0.000000e+00> : vector<1x24xf32>
    %86 = vector.multi_reduction <add>, %85, %cst_29 [2] : vector<1x24x128xf32> to vector<1x24xf32>
    %87 = vector.shape_cast %86 : vector<1x24xf32> to vector<1x24x1xf32>
    %88 = tpu.reciprocal %87 {approx = true} : vector<1x24x1xf32> -> vector<1x24x1xf32>
    %89 = vector.broadcast %88 : vector<1x24x1xf32> to vector<1x24x128xf32>
    %90 = arith.mulf %85, %89 : vector<1x24x128xf32>
    %91 = arith.truncf %90 : vector<1x24x128xf32> to vector<1x24x128xbf16>
    "tpu.trace_start"() <{level = 10 : i32, message = "bqk,bkd->bqd"}> : () -> ()
    %cst_30 = arith.constant dense<0.000000e+00> : vector<1x24x8xf32>
    %92 = tpu.matmul %91, %75, %cst_30 {dimension_numbers = #tpu.dot_dimension_numbers<[2], [1], [1], [2], [0, 0, 0, 1, 1, 2], [0], [0]>} : vector<1x24x128xbf16>, vector<1x128x8xbf16>, vector<1x24x8xf32> -> vector<1x24x8xf32>
    "tpu.trace_stop"() : () -> ()
    %93 = vector.shape_cast %92 : vector<1x24x8xf32> to vector<24x8xf32>
    %94 = arith.truncf %93 : vector<24x8xf32> to vector<24x8xbf16>
    %95 = vector.extract_strided_slice %33 {offsets = [8, 0], sizes = [8, 32], strides = [1, 1]} : vector<32x32xbf16> to vector<8x32xbf16>
    %cst_31 = arith.constant dense<0.000000e+00> : vector<24x32xf32>
    %96 = tpu.matmul %94, %95, %cst_31 {dimension_numbers = #tpu.dot_dimension_numbers<[1], [0], [0], [1], [0, 0, 1, 1], [], []>} : vector<24x8xbf16>, vector<8x32xbf16>, vector<24x32xf32> -> vector<24x32xf32>
    %97 = arith.addf %67, %96 : vector<24x32xf32>
    %98 = vector.extract_strided_slice %26 {offsets = [0, 16], sizes = [24, 8], strides = [1, 1]} : vector<24x32xbf16> to vector<24x8xbf16>
    %99 = vector.shape_cast %98 : vector<24x8xbf16> to vector<1x24x8xbf16>
    %100 = vector.extract_strided_slice %29 {offsets = [0, 16], sizes = [24, 8], strides = [1, 1]} : vector<24x32xbf16> to vector<24x8xbf16>
    %101 = vector.shape_cast %100 : vector<24x8xbf16> to vector<1x24x8xbf16>
    %102 = vector.extract_strided_slice %32 {offsets = [0, 16], sizes = [24, 8], strides = [1, 1]} : vector<24x32xbf16> to vector<24x8xbf16>
    %103 = vector.shape_cast %102 : vector<24x8xbf16> to vector<1x24x8xbf16>
    %104 = tpu.concatenate %101, %37 in 1 : vector<1x24x8xbf16>, vector<1x104x8xbf16> -> vector<1x128x8xbf16>
    %105 = tpu.concatenate %103, %37 in 1 : vector<1x24x8xbf16>, vector<1x104x8xbf16> -> vector<1x128x8xbf16>
    "tpu.trace_start"() <{level = 10 : i32, message = "bqd,bkd->bqk"}> : () -> ()
    %cst_32 = arith.constant dense<0.000000e+00> : vector<1x24x128xf32>
    %106 = tpu.matmul %99, %104, %cst_32 {dimension_numbers = #tpu.dot_dimension_numbers<[2], [2], [1], [1], [0, 0, 0, 1, 1, 1], [0], [0]>} : vector<1x24x8xbf16>, vector<1x128x8xbf16>, vector<1x24x128xf32> -> vector<1x24x128xf32>
    %cst_33 = arith.constant -1.000000e+30 : f32
    "tpu.trace_stop"() : () -> ()
    %107 = vector.shape_cast %36 : vector<1x1x128xi1> to vector<1x1x128xi1>
    %108 = vector.broadcast %107 : vector<1x1x128xi1> to vector<1x24x128xi1>
    %109 = vector.broadcast %cst_33 : f32 to vector<1x24x128xf32>
    %110 = arith.select %108, %106, %109 : vector<1x24x128xi1>, vector<1x24x128xf32>
    %cst_34 = arith.constant dense<0xFF800000> : vector<1x24xf32>
    %111 = vector.multi_reduction <maximumf>, %110, %cst_34 [2] : vector<1x24x128xf32> to vector<1x24xf32>
    %112 = vector.shape_cast %111 : vector<1x24xf32> to vector<1x24x1xf32>
    %113 = vector.broadcast %112 : vector<1x24x1xf32> to vector<1x24x128xf32>
    %114 = arith.subf %110, %113 : vector<1x24x128xf32>
    %115 = math.exp %114 : vector<1x24x128xf32>
    %cst_35 = arith.constant dense<0.000000e+00> : vector<1x24xf32>
    %116 = vector.multi_reduction <add>, %115, %cst_35 [2] : vector<1x24x128xf32> to vector<1x24xf32>
    %117 = vector.shape_cast %116 : vector<1x24xf32> to vector<1x24x1xf32>
    %118 = tpu.reciprocal %117 {approx = true} : vector<1x24x1xf32> -> vector<1x24x1xf32>
    %119 = vector.broadcast %118 : vector<1x24x1xf32> to vector<1x24x128xf32>
    %120 = arith.mulf %115, %119 : vector<1x24x128xf32>
    %121 = arith.truncf %120 : vector<1x24x128xf32> to vector<1x24x128xbf16>
    "tpu.trace_start"() <{level = 10 : i32, message = "bqk,bkd->bqd"}> : () -> ()
    %cst_36 = arith.constant dense<0.000000e+00> : vector<1x24x8xf32>
    %122 = tpu.matmul %121, %105, %cst_36 {dimension_numbers = #tpu.dot_dimension_numbers<[2], [1], [1], [2], [0, 0, 0, 1, 1, 2], [0], [0]>} : vector<1x24x128xbf16>, vector<1x128x8xbf16>, vector<1x24x8xf32> -> vector<1x24x8xf32>
    "tpu.trace_stop"() : () -> ()
    %123 = vector.shape_cast %122 : vector<1x24x8xf32> to vector<24x8xf32>
    %124 = arith.truncf %123 : vector<24x8xf32> to vector<24x8xbf16>
    %125 = vector.extract_strided_slice %33 {offsets = [16, 0], sizes = [8, 32], strides = [1, 1]} : vector<32x32xbf16> to vector<8x32xbf16>
    %cst_37 = arith.constant dense<0.000000e+00> : vector<24x32xf32>
    %126 = tpu.matmul %124, %125, %cst_37 {dimension_numbers = #tpu.dot_dimension_numbers<[1], [0], [0], [1], [0, 0, 1, 1], [], []>} : vector<24x8xbf16>, vector<8x32xbf16>, vector<24x32xf32> -> vector<24x32xf32>
    %127 = arith.addf %97, %126 : vector<24x32xf32>
    %128 = vector.extract_strided_slice %26 {offsets = [0, 24], sizes = [24, 8], strides = [1, 1]} : vector<24x32xbf16> to vector<24x8xbf16>
    %129 = vector.shape_cast %128 : vector<24x8xbf16> to vector<1x24x8xbf16>
    %130 = vector.extract_strided_slice %29 {offsets = [0, 24], sizes = [24, 8], strides = [1, 1]} : vector<24x32xbf16> to vector<24x8xbf16>
    %131 = vector.shape_cast %130 : vector<24x8xbf16> to vector<1x24x8xbf16>
    %132 = vector.extract_strided_slice %32 {offsets = [0, 24], sizes = [24, 8], strides = [1, 1]} : vector<24x32xbf16> to vector<24x8xbf16>
    %133 = vector.shape_cast %132 : vector<24x8xbf16> to vector<1x24x8xbf16>
    %134 = tpu.concatenate %131, %37 in 1 : vector<1x24x8xbf16>, vector<1x104x8xbf16> -> vector<1x128x8xbf16>
    %135 = tpu.concatenate %133, %37 in 1 : vector<1x24x8xbf16>, vector<1x104x8xbf16> -> vector<1x128x8xbf16>
    "tpu.trace_start"() <{level = 10 : i32, message = "bqd,bkd->bqk"}> : () -> ()
    %cst_38 = arith.constant dense<0.000000e+00> : vector<1x24x128xf32>
    %136 = tpu.matmul %129, %134, %cst_38 {dimension_numbers = #tpu.dot_dimension_numbers<[2], [2], [1], [1], [0, 0, 0, 1, 1, 1], [0], [0]>} : vector<1x24x8xbf16>, vector<1x128x8xbf16>, vector<1x24x128xf32> -> vector<1x24x128xf32>
    %cst_39 = arith.constant -1.000000e+30 : f32
    "tpu.trace_stop"() : () -> ()
    %137 = vector.shape_cast %36 : vector<1x1x128xi1> to vector<1x1x128xi1>
    %138 = vector.broadcast %137 : vector<1x1x128xi1> to vector<1x24x128xi1>
    %139 = vector.broadcast %cst_39 : f32 to vector<1x24x128xf32>
    %140 = arith.select %138, %136, %139 : vector<1x24x128xi1>, vector<1x24x128xf32>
    %cst_40 = arith.constant dense<0xFF800000> : vector<1x24xf32>
    %141 = vector.multi_reduction <maximumf>, %140, %cst_40 [2] : vector<1x24x128xf32> to vector<1x24xf32>
    %142 = vector.shape_cast %141 : vector<1x24xf32> to vector<1x24x1xf32>
    %143 = vector.broadcast %142 : vector<1x24x1xf32> to vector<1x24x128xf32>
    %144 = arith.subf %140, %143 : vector<1x24x128xf32>
    %145 = math.exp %144 : vector<1x24x128xf32>
    %cst_41 = arith.constant dense<0.000000e+00> : vector<1x24xf32>
    %146 = vector.multi_reduction <add>, %145, %cst_41 [2] : vector<1x24x128xf32> to vector<1x24xf32>
    %147 = vector.shape_cast %146 : vector<1x24xf32> to vector<1x24x1xf32>
    %148 = tpu.reciprocal %147 {approx = true} : vector<1x24x1xf32> -> vector<1x24x1xf32>
    %149 = vector.broadcast %148 : vector<1x24x1xf32> to vector<1x24x128xf32>
    %150 = arith.mulf %145, %149 : vector<1x24x128xf32>
    %151 = arith.truncf %150 : vector<1x24x128xf32> to vector<1x24x128xbf16>
    "tpu.trace_start"() <{level = 10 : i32, message = "bqk,bkd->bqd"}> : () -> ()
    %cst_42 = arith.constant dense<0.000000e+00> : vector<1x24x8xf32>
    %152 = tpu.matmul %151, %135, %cst_42 {dimension_numbers = #tpu.dot_dimension_numbers<[2], [1], [1], [2], [0, 0, 0, 1, 1, 2], [0], [0]>} : vector<1x24x128xbf16>, vector<1x128x8xbf16>, vector<1x24x8xf32> -> vector<1x24x8xf32>
    "tpu.trace_stop"() : () -> ()
    %153 = vector.shape_cast %152 : vector<1x24x8xf32> to vector<24x8xf32>
    %154 = arith.truncf %153 : vector<24x8xf32> to vector<24x8xbf16>
    %155 = vector.extract_strided_slice %33 {offsets = [24, 0], sizes = [8, 32], strides = [1, 1]} : vector<32x32xbf16> to vector<8x32xbf16>
    %cst_43 = arith.constant dense<0.000000e+00> : vector<24x32xf32>
    %156 = tpu.matmul %154, %155, %cst_43 {dimension_numbers = #tpu.dot_dimension_numbers<[1], [0], [0], [1], [0, 0, 1, 1], [], []>} : vector<24x8xbf16>, vector<8x32xbf16>, vector<24x32xf32> -> vector<24x32xf32>
    %157 = arith.addf %127, %156 : vector<24x32xf32>
    %c0_44 = arith.constant 0 : index
    %c0_45 = arith.constant 0 : index
    %158 = vector.load %arg7[%c0_44, %c0_45] : memref<1x32xf32, #tpu.memory_space<vmem>>, vector<1x32xf32>
    %cst_46 = arith.constant dense<0.000000e+00> : vector<24xf32>
    %159 = vector.multi_reduction <add>, %157, %cst_46 [1] : vector<24x32xf32> to vector<24xf32>
    %160 = vector.shape_cast %159 : vector<24xf32> to vector<24x1xf32>
    %cst_47 = arith.constant 3.200000e+01 : f32
    %161 = vector.broadcast %cst_47 : f32 to vector<24x1xf32>
    %162 = arith.divf %160, %161 : vector<24x1xf32>
    %163 = vector.broadcast %162 : vector<24x1xf32> to vector<24x32xf32>
    %164 = arith.subf %157, %163 : vector<24x32xf32>
    %165 = arith.mulf %164, %164 : vector<24x32xf32>
    %cst_48 = arith.constant dense<0.000000e+00> : vector<24xf32>
    %166 = vector.multi_reduction <add>, %165, %cst_48 [1] : vector<24x32xf32> to vector<24xf32>
    %167 = vector.shape_cast %166 : vector<24xf32> to vector<24x1xf32>
    %cst_49 = arith.constant 3.200000e+01 : f32
    %168 = vector.broadcast %cst_49 : f32 to vector<24x1xf32>
    %169 = arith.divf %167, %168 : vector<24x1xf32>
    %170 = vector.broadcast %162 : vector<24x1xf32> to vector<24x32xf32>
    %171 = arith.subf %157, %170 : vector<24x32xf32>
    %cst_50 = arith.constant 9.99999974E-6 : f32
    %172 = vector.broadcast %cst_50 : f32 to vector<24x1xf32>
    %173 = arith.addf %169, %172 : vector<24x1xf32>
    %174 = math.rsqrt %173 : vector<24x1xf32>
    %175 = vector.broadcast %174 : vector<24x1xf32> to vector<24x32xf32>
    %176 = arith.mulf %171, %175 : vector<24x32xf32>
    %177 = vector.broadcast %158 : vector<1x32xf32> to vector<24x32xf32>
    %178 = arith.mulf %176, %177 : vector<24x32xf32>
    %179 = arith.truncf %178 : vector<24x32xf32> to vector<24x32xbf16>
    %c0_51 = arith.constant 0 : index
    %c0_52 = arith.constant 0 : index
    %180 = vector.load %arg8[%c0_51, %c0_52] : memref<32x128xbf16, #tpu.memory_space<vmem>>, vector<32x128xbf16>
    %cst_53 = arith.constant dense<0.000000e+00> : vector<24x128xf32>
    %181 = tpu.matmul %179, %180, %cst_53 {dimension_numbers = #tpu.dot_dimension_numbers<[1], [0], [0], [1], [0, 0, 1, 1], [], []>} : vector<24x32xbf16>, vector<32x128xbf16>, vector<24x128xf32> -> vector<24x128xf32>
    %182 = arith.mulf %181, %181 : vector<24x128xf32>
    %183 = arith.mulf %181, %182 : vector<24x128xf32>
    %cst_54 = arith.constant 4.471500e-02 : f32
    %184 = vector.broadcast %cst_54 : f32 to vector<24x128xf32>
    %185 = arith.mulf %184, %183 : vector<24x128xf32>
    %186 = arith.addf %181, %185 : vector<24x128xf32>
    %cst_55 = arith.constant 0.797884583 : f32
    %187 = vector.broadcast %cst_55 : f32 to vector<24x128xf32>
    %188 = arith.mulf %187, %186 : vector<24x128xf32>
    %189 = math.tanh %188 : vector<24x128xf32>
    %cst_56 = arith.constant 1.000000e+00 : f32
    %190 = vector.broadcast %cst_56 : f32 to vector<24x128xf32>
    %191 = arith.addf %190, %189 : vector<24x128xf32>
    %cst_57 = arith.constant 5.000000e-01 : f32
    %192 = vector.broadcast %cst_57 : f32 to vector<24x128xf32>
    %193 = arith.mulf %192, %191 : vector<24x128xf32>
    %194 = arith.mulf %181, %193 : vector<24x128xf32>
    %195 = arith.truncf %194 : vector<24x128xf32> to vector<24x128xbf16>
    %c0_58 = arith.constant 0 : index
    %c0_59 = arith.constant 0 : index
    %196 = vector.load %arg9[%c0_58, %c0_59] : memref<128x32xbf16, #tpu.memory_space<vmem>>, vector<128x32xbf16>
    %cst_60 = arith.constant dense<0.000000e+00> : vector<24x32xf32>
    %197 = tpu.matmul %195, %196, %cst_60 {dimension_numbers = #tpu.dot_dimension_numbers<[1], [0], [0], [1], [0, 0, 1, 1], [], []>} : vector<24x128xbf16>, vector<128x32xbf16>, vector<24x32xf32> -> vector<24x32xf32>
    %198 = arith.addf %157, %197 : vector<24x32xf32>
    %199 = vector.shape_cast %198 : vector<24x32xf32> to vector<1x24x32xf32>
    %c0_61 = arith.constant 0 : index
    %c0_62 = arith.constant 0 : index
    %c0_63 = arith.constant 0 : index
    %200 = vector.load %arg10[%c0_61, %c0_62, %c0_63] : memref<1x24x32xf32, #tpu.memory_space<vmem>>, vector<1x24x32xf32>
    tpu.vector_store %arg10[%c0_61, %c0_62, %c0_63], %199 {strides = array<i32>} : memref<1x24x32xf32, #tpu.memory_space<vmem>>, vector<1x24x32xf32>,
    return
  }
  func.func @transform_0(%arg0: i32) -> (i32, i32, i32) {
    %c0_i32 = arith.constant 0 : i32
    %c0_i32_0 = arith.constant 0 : i32
    %c0_i32_1 = arith.constant 0 : i32
    return %arg0, %c0_i32, %c0_i32_0 : i32, i32, i32
  }
  func.func @transform_1(%arg0: i32) -> (i32, i32) {
    %c0_i32 = arith.constant 0 : i32
    %c0_i32_0 = arith.constant 0 : i32
    %c0_i32_1 = arith.constant 0 : i32
    return %c0_i32, %c0_i32_0 : i32, i32
  }
  func.func @transform_2(%arg0: i32) -> (i32, i32) {
    %c0_i32 = arith.constant 0 : i32
    %c0_i32_0 = arith.constant 0 : i32
    %c0_i32_1 = arith.constant 0 : i32
    return %c0_i32, %c0_i32_0 : i32, i32
  }
  func.func @transform_3(%arg0: i32) -> (i32, i32) {
    %c0_i32 = arith.constant 0 : i32
    %c0_i32_0 = arith.constant 0 : i32
    %c0_i32_1 = arith.constant 0 : i32
    return %c0_i32, %c0_i32_0 : i32, i32
  }
  func.func @transform_4(%arg0: i32) -> (i32, i32) {
    %c0_i32 = arith.constant 0 : i32
    %c0_i32_0 = arith.constant 0 : i32
    %c0_i32_1 = arith.constant 0 : i32
    return %c0_i32, %c0_i32_0 : i32, i32
  }
  func.func @transform_5(%arg0: i32) -> (i32, i32) {
    %c0_i32 = arith.constant 0 : i32
    %c0_i32_0 = arith.constant 0 : i32
    %c0_i32_1 = arith.constant 0 : i32
    return %c0_i32, %c0_i32_0 : i32, i32
  }
  func.func @transform_6(%arg0: i32) -> (i32, i32) {
    %c0_i32 = arith.constant 0 : i32
    %c0_i32_0 = arith.constant 0 : i32
    %c0_i32_1 = arith.constant 0 : i32
    return %c0_i32, %c0_i32_0 : i32, i32
  }
  func.func @transform_7(%arg0: i32) -> (i32, i32) {
    %c0_i32 = arith.constant 0 : i32
    %c0_i32_0 = arith.constant 0 : i32
    %c0_i32_1 = arith.constant 0 : i32
    return %c0_i32, %c0_i32_0 : i32, i32
  }
  func.func @transform_8(%arg0: i32) -> (i32, i32) {
    %c0_i32 = arith.constant 0 : i32
    %c0_i32_0 = arith.constant 0 : i32
    %c0_i32_1 = arith.constant 0 : i32
    return %c0_i32, %c0_i32_0 : i32, i32
  }
  func.func @transform_9(%arg0: i32) -> (i32, i32, i32) {
    %c0_i32 = arith.constant 0 : i32
    %c0_i32_0 = arith.constant 0 : i32
    %c0_i32_1 = arith.constant 0 : i32
    return %arg0, %c0_i32, %c0_i32_0 : i32, i32, i32
  }
}

</mosaic_0001>

<llo_original>
// kernel: encoder_forward.3
$region0: #{encoder_forward.3}
  #allocation0 [shape = 'u32[]', space=smem, size = 0x4, offset = 0x4, fixed_abs, tag = 'smem constant byte address 0x4 - core index']
  #allocation1 [shape = 'u32[144,128]{1,0:T(1,128)}', space=vmem, size = 0x12000, scoped, tag = 'internal scratch']
  %s0 = inlined_call_operand.vmem [shape: bf16[2,24,64], index: 0, kind: input, shape index: {}]
  %s1 = inlined_call_operand.vmem [shape: bf16[64,32], index: 1, kind: input, shape index: {}]
  %s2 = inlined_call_operand.vmem [shape: f32[24,32], index: 2, kind: input, shape index: {}]
  %s3 = inlined_call_operand.vmem [shape: f32[2,24,32], index: 3, kind: output, shape index: {}]
  %s4 = sld [smem:[#allocation0]]
  $region45: #{encoder_forward.3} parent=0
    _
  %s6 = ssub.s32 1, %s4
  %s7 = scalar_select 0, %s6, %s4
  loop: start=0, step=1, limit=4
  $region2: #{encoder_forward.3} parent=0 // loop_pre_header
    _
  $region3: #{encoder_forward.3} parent=0 // loop_header
    %s9 = sphi 0, %s13
    %p10 = scmp.ge.s32.totalorder %s9, 4
    %s19 = sphi 0, %s21
    %s22 = sphi 0, %s19
    %s23 = sphi 0, %s22
    %s39 = sphi 0, %s23
    %s43 = sphi 0, %s43
    %s45 = sphi 0, %s43
    %s46 = sphi 0, %s45
    %s60 = sphi 0, %s46
    %s64 = sphi 0, %s64
    %s66 = sphi 0, %s64
    %s67 = sphi 0, %s66
    %s81 = sphi 0, %s67
    %s87 = sphi 0, %s89
    %s90 = sphi 0, %s87
    %s91 = sphi 0, %s90
    %s107 = sphi 0, %s91
  $region4: #{encoder_forward.3} parent=0 // loop_header_branch
    %12 = sbr.rel (%p10) target = $region8
  $region5: #{encoder_forward.3} parent=0 // loop_body
    %s14 = ssub.s32 %s9, 1
    %s15 = ssub.s32 %s9, 2
    %s16 = sadd.s32 %s9, 1
    %s17 = ssub.s32 %s9, %s16
    %p18 = scmp.eq.s32.totalorder %s17, 0
    %s20 = sadd.s32 %s19, 1
    %s21 = scalar_select %p18, %s19, %s20
    %p24 = pneg %p18
    %p25 = scmp.eq.s32.totalorder %s9, 1
    %p26 = por %p24, %p25
    %p27 = scmp.ne.s32.totalorder %s19, %s22
    %p28 = scmp.eq.s32.totalorder %s9, 0
    %p29 = por %p27, %p28
    %p30 = scmp.ne.s32.totalorder %s19, %s22
    %p31 = scmp.eq.s32.totalorder %s14, 1
    %p32 = por %p30, %p31
    %p33 = scmp.ne.s32.totalorder %s22, %s23
    %p34 = scmp.eq.s32.totalorder %s14, 0
    %p35 = por %p33, %p34
    %p36 = scmp.ne.s32.totalorder %s22, %s23
    %p37 = scmp.eq.s32.totalorder %s15, 1
    %p38 = por %p36, %p37
    %p40 = scmp.ne.s32.totalorder %s23, %s39
    %p41 = scmp.eq.s32.totalorder %s15, 0
    %p42 = por %p40, %p41
    %s44 = sadd.s32 %s43, 1
    %p47 = scmp.eq.s32.totalorder %s9, 1
    %p48 = scmp.ne.s32.totalorder %s43, %s45
    %p49 = scmp.eq.s32.totalorder %s9, 0
    %p50 = por %p48, %p49
    %p51 = scmp.ne.s32.totalorder %s43, %s45
    %p52 = scmp.eq.s32.totalorder %s14, 1
    %p53 = por %p51, %p52
    %p54 = scmp.ne.s32.totalorder %s45, %s46
    %p55 = scmp.eq.s32.totalorder %s14, 0
    %p56 = por %p54, %p55
    %p57 = scmp.ne.s32.totalorder %s45, %s46
    %p58 = scmp.eq.s32.totalorder %s15, 1
    %p59 = por %p57, %p58
    %p61 = scmp.ne.s32.totalorder %s46, %s60
    %p62 = scmp.eq.s32.totalorder %s15, 0
    %p63 = por %p61, %p62
    %s65 = sadd.s32 %s64, 1
    %p68 = scmp.eq.s32.totalorder %s9, 1
    %p69 = scmp.ne.s32.totalorder %s64, %s66
    %p70 = scmp.eq.s32.totalorder %s9, 0
    %p71 = por %p69, %p70
    %p72 = scmp.ne.s32.totalorder %s64, %s66
    %p73 = scmp.eq.s32.totalorder %s14, 1
    %p74 = por %p72, %p73
    %p75 = scmp.ne.s32.totalorder %s66, %s67
    %p76 = scmp.eq.s32.totalorder %s14, 0
    %p77 = por %p75, %p76
    %p78 = scmp.ne.s32.totalorder %s66, %s67
    %p79 = scmp.eq.s32.totalorder %s15, 1
    %p80 = por %p78, %p79
    %p82 = scmp.ne.s32.totalorder %s67, %s81
    %p83 = scmp.eq.s32.totalorder %s15, 0
    %p84 = por %p82, %p83
    %s85 = ssub.s32 %s9, %s16
    %p86 = scmp.eq.s32.totalorder %s85, 0
    %s88 = sadd.s32 %s87, 1
    %s89 = scalar_select %p86, %s87, %s88
    %p92 = pneg %p86
    %p93 = scmp.eq.s32.totalorder %s9, 1
    %p94 = por %p92, %p93
    %p95 = scmp.ne.s32.totalorder %s87, %s90
    %p96 = scmp.eq.s32.totalorder %s9, 0
    %p97 = por %p95, %p96
    %p98 = scmp.ne.s32.totalorder %s87, %s90
    %p99 = scmp.eq.s32.totalorder %s14, 1
    %p100 = por %p98, %p99
    %p101 = scmp.ne.s32.totalorder %s90, %s91
    %p102 = scmp.eq.s32.totalorder %s14, 0
    %p103 = por %p101, %p102
    %p104 = scmp.ne.s32.totalorder %s90, %s91
    %p105 = scmp.eq.s32.totalorder %s15, 1
    %p106 = por %p104, %p105
    %p108 = scmp.ne.s32.totalorder %s91, %s107
    %p109 = scmp.eq.s32.totalorder %s15, 0
    %p110 = por %p108, %p109
    %p111 = scmp.le.s32.totalorder 1, %s9
    %p112 = scmp.lt.s32.totalorder %s9, 3
    %p113 = pnand %p111, %p112
    %p114 = pneg %p113
    // Predicated region
    $region9: #{encoder_forward.3} parent=5 // pred_check
      _
    $region10: #{encoder_forward.3} parent=5 // pred_check_branch
      %116 = sbr.rel (%p113) target = $region12
    $region11: #{encoder_forward.3} parent=5 // pred_region
      %s117 = ssub.s32 %s9, 1
      // Predicated region
      $region13: #{encoder_forward.3} parent=11 // pred_check
        %p118 = pneg %p56
      $region14: #{encoder_forward.3} parent=11 // pred_check_branch
        %120 = sbr.rel (%p118) target = $region16
      $region15: #{encoder_forward.3} parent=11 // pred_region
        _
      $region16: #{encoder_forward.3} parent=11 // pred_fallthru
        _
      // Predicated region
      $region17: #{encoder_forward.3} parent=11 // pred_check
        %p121 = pneg %p77
      $region18: #{encoder_forward.3} parent=11 // pred_check_branch
        %123 = sbr.rel (%p121) target = $region20
      $region19: #{encoder_forward.3} parent=11 // pred_region
        _
      $region20: #{encoder_forward.3} parent=11 // pred_fallthru
        _
    $region12: #{encoder_forward.3} parent=5 // pred_fallthru
      _
    %p124 = scmp.lt.s32.totalorder %s9, 2
    // Predicated region
    $region21: #{encoder_forward.3} parent=5 // pred_check
      %p125 = pneg %p124
    $region22: #{encoder_forward.3} parent=5 // pred_check_branch
      %127 = sbr.rel (%p125) target = $region24
    $region23: #{encoder_forward.3} parent=5 // pred_region
      // Predicated region
      $region25: #{encoder_forward.3} parent=23 // pred_check
        %p128 = pneg %p29
      $region26: #{encoder_forward.3} parent=23 // pred_check_branch
        %130 = sbr.rel (%p128) target = $region28
      $region27: #{encoder_forward.3} parent=23 // pred_region
        %p131 = scmp.lt.s32.totalorder %s9, 1
        %s132 = scalar_select %p131, %s9, 1
        %s133 = smul.addr %s132, 3
        %s134 = smul.addr %s133, 4
        %s135 = scalar_lea.vmem %s0, %s134
      $region28: #{encoder_forward.3} parent=23 // pred_fallthru
        _
    $region24: #{encoder_forward.3} parent=5 // pred_fallthru
      _
    %p136 = scmp.le.s32.totalorder 1, %s9
    %p137 = scmp.lt.s32.totalorder %s9, 3
    %p138 = pnand %p136, %p137
    %p139 = pneg %p138
    // Predicated region
    $region29: #{encoder_forward.3} parent=5 // pred_check
      _
    $region30: #{encoder_forward.3} parent=5 // pred_check_branch
      %141 = sbr.rel (%p138) target = $region32
    $region31: #{encoder_forward.3} parent=5 // pred_region
      %s142 = ssub.s32 %s9, 1
      %p143 = scmp.lt.s32.totalorder %s14, 1
      %s144 = scalar_select %p143, %s14, 1
      %s145 = smul.addr %s144, 3
      %s146 = smul.addr %s145, 4
      %s147 = scalar_lea.vmem %s0, %s146
      %p148 = pneg %p35
      %p149 = pneg %p32
      %p150 = pneg %p56
      %p151 = pneg %p53
      %p152 = pneg %p77
      %p153 = pneg %p74
      %p154 = pneg %p103
      %p155 = pneg %p100
      %p156 = scmp.lt.s32.totalorder %s14, 1
      %s157 = scalar_select %p156, %s14, 1
      %s158 = smul.addr %s157, 3
      %s159 = smul.addr %s158, 8
      %s160 = scalar_lea.vmem %s3, %s159
      %p161 = scmp.lt.s32.totalorder %s14, 1
      %s162 = scalar_select %p161, %s14, 1
      %s163 = smul.addr %s162, 3
      %s164 = smul.addr %s163, 4
      %s165 = scalar_lea.vmem %s0, %s164
      %p166 = scmp.lt.s32.totalorder %s14, 1
      %s167 = scalar_select %p166, %s14, 1
      %s168 = smul.addr %s167, 3
      %s169 = smul.addr %s168, 8
      %s170 = scalar_lea.vmem %s3, %s169
      %v172 = vld [vmem:[%s165] sm:$0xf]
      %v173 = vld [vmem:[%s165 + $0x4] sm:$0xf]
      %v174 = vld [vmem:[%s165 + $0x8] sm:$0xf]
      %v175 = vld [vmem:[%s1] sm:$0xf]
      %v176 = vld [vmem:[%s1 + $0x4] sm:$0xf]
      %v177 = vld [vmem:[%s1 + $0x8] sm:$0xf]
      %v178 = vld [vmem:[%s1 + $0xc] sm:$0xf]
      %v179 = vld [vmem:[%s1 + $0x10] sm:$0xf]
      %v180 = vld [vmem:[%s1 + $0x14] sm:$0xf]
      %v181 = vld [vmem:[%s1 + $0x18] sm:$0xf]
      %v182 = vld [vmem:[%s1 + $0x1c] sm:$0xf]
      %v186 = vunpack.c.l.b16 %v172
      %v187 = vunpack.c.l.b16 %v173
      %v188 = vunpack.c.l.b16 %v174
      %v189 = vpack.c.b16 %v187, %v186
      %v190 = vpack.c.b16 %v188, %v188
      %v199 = vunpack.c.l.b16 %v175
      %v200 = vunpack.c.l.b16 %v176
      %v201 = vunpack.c.l.b16 %v177
      %v202 = vunpack.c.l.b16 %v178
      %v203 = vunpack.c.l.b16 %v179
      %v204 = vunpack.c.l.b16 %v180
      %v205 = vunpack.c.l.b16 %v181
      %v206 = vunpack.c.l.b16 %v182
      %v207 = vpack.c.b16 %v200, %v199
      %v208 = vpack.c.b16 %v202, %v201
      %v209 = vpack.c.b16 %v204, %v203
      %v210 = vpack.c.b16 %v206, %v205
      %vm215 = vcmask 523264
      %v217 = vsel %vm215, %v189, 0
      %v220 = vsel %vm215, %v190, 0
      %222 = vmatprep.subr.bf16.mxu0 0
      %223 = vmatpush1.bf16.msra.mxu0 %v207
      %224 = vmatprep.subr.bf16.mxu0 0
      %225 = vmatpush1.bf16.msra.mxu0 %v208
      %226 = vmatprep.subr.bf16.mxu0 0
      %227 = vmatpush1.bf16.msra.mxu0 %v209
      %228 = vmatprep.subr.bf16.mxu0 0
      %229 = vmatpush1.bf16.msra.mxu0 %v210
      %230 = vmatprep.subr.bf16.mxu0 0
      %231 = vmatpush1.bf16.msra.mxu0 0
      %232 = vmatprep.subr.bf16.mxu0 0
      %233 = vmatpush1.bf16.msra.mxu0 0
      %234 = vmatprep.subr.bf16.mxu0 0
      %235 = vmatpush1.bf16.msra.mxu0 0
      %236 = vmatprep.subr.bf16.mxu0 0
      %237 = vmatpush1.bf16.msra.mxu0 0
      %238 = vmatprep.subr.bf16.mxu0 0
      %239 = vmatpush1.bf16.msra.mxu0 0
      %240 = vmatprep.subr.bf16.mxu0 0
      %241 = vmatpush1.bf16.msra.mxu0 0
      %242 = vmatprep.subr.bf16.mxu0 0
      %243 = vmatpush1.bf16.msra.mxu0 0
      %244 = vmatprep.subr.bf16.mxu0 0
      %245 = vmatpush1.bf16.msra.mxu0 0
      %246 = vmatprep.subr.bf16.mxu0 0
      %247 = vmatpush1.bf16.msra.mxu0 0
      %248 = vmatprep.subr.bf16.mxu0 0
      %249 = vmatpush1.bf16.msra.mxu0 0
      %250 = vmatprep.subr.bf16.mxu0 0
      %251 = vmatpush1.bf16.msra.mxu0 0
      %252 = vmatprep.subr.bf16.mxu0 0
      %253 = vmatpush1.bf16.msra.mxu0 0
      %254 = vmatprep.mubr.bf16.mxu0 0
      %255 = vmatmul.mubr.bf16.gmra.mrb[0].mxu0 %v217
      %v256 = vpop.f32.mrb[0].mxu0
      %v257 = vadd.f32 0.0, %v256
      %v258 = vpop.f32.mrb[0].mxu0
      %v259 = vpop.f32.mrb[0].mxu0
      %v260 = vadd.f32 0.0, %v259
      %v261 = vpop.f32.mrb[0].mxu0
      %262 = vmatprep.mubr.bf16.mxu0 0
      %263 = vmatmul.mubr.bf16.gmra.mrb[0].mxu0 %v220
      %v264 = vpop.f32.mrb[0].mxu0
      %v265 = vadd.f32 0.0, %v264
      %v266 = vpop.f32.mrb[0].mxu0
      %v267 = vpop.f32.mrb[0].mxu0
      %v268 = vpop.f32.mrb[0].mxu0
      %269 = vdwg.mxu0
      %v270 = vld [vmem:[%s2] sm:$0xff]
      %v271 = vld [vmem:[%s2 + $0x8] sm:$0xff]
      %v272 = vld [vmem:[%s2 + $0x10] sm:$0xff]
      %v273 = vadd.f32 %v257, %v270
      %v274 = vadd.f32 %v260, %v271
      %v275 = vadd.f32 %v265, %v272
      %vm276 = vcmask 261120
      %277 = vst.msk [vmem:[%s170] sm:$0xff] %vm276, %v273
      %278 = vst.msk [vmem:[%s170 + $0x8] sm:$0xff] %vm276, %v274
      %279 = vst.msk [vmem:[%s170 + $0x10] sm:$0xff] %vm276, %v275
      %p280 = scmp.lt.s32.totalorder %s14, 1
      %s281 = scalar_select %p280, %s14, 1
      %s282 = smul.addr %s281, 3
      %s283 = smul.addr %s282, 8
      %s284 = scalar_lea.vmem %s3, %s283
      // Predicated region
      $region33: #{encoder_forward.3} parent=31 // pred_check
        %p285 = pneg %p100
      $region34: #{encoder_forward.3} parent=31 // pred_check_branch
        %287 = sbr.rel (%p285) target = $region36
      $region35: #{encoder_forward.3} parent=31 // pred_region
        _
      $region36: #{encoder_forward.3} parent=31 // pred_fallthru
        _
    $region32: #{encoder_forward.3} parent=5 // pred_fallthru
      _
    %p288 = scmp.le.s32.totalorder 2, %s9
    // Predicated region
    $region37: #{encoder_forward.3} parent=5 // pred_check
      %p289 = pneg %p288
    $region38: #{encoder_forward.3} parent=5 // pred_check_branch
      %291 = sbr.rel (%p289) target = $region40
    $region39: #{encoder_forward.3} parent=5 // pred_region
      %s292 = ssub.s32 %s9, 2
      // Predicated region
      $region41: #{encoder_forward.3} parent=39 // pred_check
        %p293 = pneg %p106
      $region42: #{encoder_forward.3} parent=39 // pred_check_branch
        %295 = sbr.rel (%p293) target = $region44
      $region43: #{encoder_forward.3} parent=39 // pred_region
        %p296 = scmp.lt.s32.totalorder %s15, 1
        %s297 = scalar_select %p296, %s15, 1
        %s298 = smul.addr %s297, 3
        %s299 = smul.addr %s298, 8
        %s300 = scalar_lea.vmem %s3, %s299
      $region44: #{encoder_forward.3} parent=39 // pred_fallthru
        _
    $region40: #{encoder_forward.3} parent=5 // pred_fallthru
      _
  $region6: #{encoder_forward.3} parent=0 // loop_footer
    %s13 = sadd.s32 1, %s9
  $region7: #{encoder_forward.3} parent=0 // loop_footer_branch
    %8 = sbr.rel target = $region3
  $region8: #{encoder_forward.3} parent=0 // loop_exit
    _

// kernel: encoder_forward.4
$region0: #{encoder_forward.4}
  #allocation0 [shape = 'u32[]', space=smem, size = 0x4, offset = 0x4, fixed_abs, tag = 'smem constant byte address 0x4 - core index']
  #allocation1 [shape = 'u32[144,128]{1,0:T(1,128)}', space=vmem, size = 0x12000, scoped, tag = 'internal scratch']
  %s0 = inlined_call_operand.vmem [shape: f32[2,24,32], index: 0, kind: input, shape index: {}]
  %s1 = inlined_call_operand.vmem [shape: f32[1,32], index: 1, kind: input, shape index: {}]
  %s2 = inlined_call_operand.vmem [shape: bf16[32,32], index: 2, kind: input, shape index: {}]
  %s3 = inlined_call_operand.vmem [shape: bf16[32,32], index: 3, kind: input, shape index: {}]
  %s4 = inlined_call_operand.vmem [shape: bf16[32,32], index: 4, kind: input, shape index: {}]
  %s5 = inlined_call_operand.vmem [shape: bf16[32,32], index: 5, kind: input, shape index: {}]
  %s6 = inlined_call_operand.vmem [shape: f32[1,32], index: 6, kind: input, shape index: {}]
  %s7 = inlined_call_operand.vmem [shape: bf16[32,128], index: 7, kind: input, shape index: {}]
  %s8 = inlined_call_operand.vmem [shape: bf16[128,32], index: 8, kind: input, shape index: {}]
  %s9 = inlined_call_operand.vmem [shape: f32[2,24,32], index: 9, kind: output, shape index: {}]
  %s10 = sld [smem:[#allocation0]]
  $region69: #{encoder_forward.4} parent=0
    _
  %s12 = ssub.s32 1, %s10
  %s13 = scalar_select 0, %s12, %s10
  loop: start=0, step=1, limit=4
  $region2: #{encoder_forward.4} parent=0 // loop_pre_header
    _
  $region3: #{encoder_forward.4} parent=0 // loop_header
    %s15 = sphi 0, %s19
    %p16 = scmp.ge.s32.totalorder %s15, 4
    %s25 = sphi 0, %s27
    %s28 = sphi 0, %s25
    %s29 = sphi 0, %s28
    %s45 = sphi 0, %s29
    %s49 = sphi 0, %s49
    %s51 = sphi 0, %s49
    %s52 = sphi 0, %s51
    %s66 = sphi 0, %s52
    %s70 = sphi 0, %s70
    %s72 = sphi 0, %s70
    %s73 = sphi 0, %s72
    %s87 = sphi 0, %s73
    %s91 = sphi 0, %s91
    %s93 = sphi 0, %s91
    %s94 = sphi 0, %s93
    %s108 = sphi 0, %s94
    %s112 = sphi 0, %s112
    %s114 = sphi 0, %s112
    %s115 = sphi 0, %s114
    %s129 = sphi 0, %s115
    %s133 = sphi 0, %s133
    %s135 = sphi 0, %s133
    %s136 = sphi 0, %s135
    %s150 = sphi 0, %s136
    %s154 = sphi 0, %s154
    %s156 = sphi 0, %s154
    %s157 = sphi 0, %s156
    %s171 = sphi 0, %s157
    %s175 = sphi 0, %s175
    %s177 = sphi 0, %s175
    %s178 = sphi 0, %s177
    %s192 = sphi 0, %s178
    %s196 = sphi 0, %s196
    %s198 = sphi 0, %s196
    %s199 = sphi 0, %s198
    %s213 = sphi 0, %s199
    %s219 = sphi 0, %s221
    %s222 = sphi 0, %s219
    %s223 = sphi 0, %s222
    %s239 = sphi 0, %s223
  $region4: #{encoder_forward.4} parent=0 // loop_header_branch
    %18 = sbr.rel (%p16) target = $region8
  $region5: #{encoder_forward.4} parent=0 // loop_body
    %s20 = ssub.s32 %s15, 1
    %s21 = ssub.s32 %s15, 2
    %s22 = sadd.s32 %s15, 1
    %s23 = ssub.s32 %s15, %s22
    %p24 = scmp.eq.s32.totalorder %s23, 0
    %s26 = sadd.s32 %s25, 1
    %s27 = scalar_select %p24, %s25, %s26
    %p30 = pneg %p24
    %p31 = scmp.eq.s32.totalorder %s15, 1
    %p32 = por %p30, %p31
    %p33 = scmp.ne.s32.totalorder %s25, %s28
    %p34 = scmp.eq.s32.totalorder %s15, 0
    %p35 = por %p33, %p34
    %p36 = scmp.ne.s32.totalorder %s25, %s28
    %p37 = scmp.eq.s32.totalorder %s20, 1
    %p38 = por %p36, %p37
    %p39 = scmp.ne.s32.totalorder %s28, %s29
    %p40 = scmp.eq.s32.totalorder %s20, 0
    %p41 = por %p39, %p40
    %p42 = scmp.ne.s32.totalorder %s28, %s29
    %p43 = scmp.eq.s32.totalorder %s21, 1
    %p44 = por %p42, %p43
    %p46 = scmp.ne.s32.totalorder %s29, %s45
    %p47 = scmp.eq.s32.totalorder %s21, 0
    %p48 = por %p46, %p47
    %s50 = sadd.s32 %s49, 1
    %p53 = scmp.eq.s32.totalorder %s15, 1
    %p54 = scmp.ne.s32.totalorder %s49, %s51
    %p55 = scmp.eq.s32.totalorder %s15, 0
    %p56 = por %p54, %p55
    %p57 = scmp.ne.s32.totalorder %s49, %s51
    %p58 = scmp.eq.s32.totalorder %s20, 1
    %p59 = por %p57, %p58
    %p60 = scmp.ne.s32.totalorder %s51, %s52
    %p61 = scmp.eq.s32.totalorder %s20, 0
    %p62 = por %p60, %p61
    %p63 = scmp.ne.s32.totalorder %s51, %s52
    %p64 = scmp.eq.s32.totalorder %s21, 1
    %p65 = por %p63, %p64
    %p67 = scmp.ne.s32.totalorder %s52, %s66
    %p68 = scmp.eq.s32.totalorder %s21, 0
    %p69 = por %p67, %p68
    %s71 = sadd.s32 %s70, 1
    %p74 = scmp.eq.s32.totalorder %s15, 1
    %p75 = scmp.ne.s32.totalorder %s70, %s72
    %p76 = scmp.eq.s32.totalorder %s15, 0
    %p77 = por %p75, %p76
    %p78 = scmp.ne.s32.totalorder %s70, %s72
    %p79 = scmp.eq.s32.totalorder %s20, 1
    %p80 = por %p78, %p79
    %p81 = scmp.ne.s32.totalorder %s72, %s73
    %p82 = scmp.eq.s32.totalorder %s20, 0
    %p83 = por %p81, %p82
    %p84 = scmp.ne.s32.totalorder %s72, %s73
    %p85 = scmp.eq.s32.totalorder %s21, 1
    %p86 = por %p84, %p85
    %p88 = scmp.ne.s32.totalorder %s73, %s87
    %p89 = scmp.eq.s32.totalorder %s21, 0
    %p90 = por %p88, %p89
    %s92 = sadd.s32 %s91, 1
    %p95 = scmp.eq.s32.totalorder %s15, 1
    %p96 = scmp.ne.s32.totalorder %s91, %s93
    %p97 = scmp.eq.s32.totalorder %s15, 0
    %p98 = por %p96, %p97
    %p99 = scmp.ne.s32.totalorder %s91, %s93
    %p100 = scmp.eq.s32.totalorder %s20, 1
    %p101 = por %p99, %p100
    %p102 = scmp.ne.s32.totalorder %s93, %s94
    %p103 = scmp.eq.s32.totalorder %s20, 0
    %p104 = por %p102, %p103
    %p105 = scmp.ne.s32.totalorder %s93, %s94
    %p106 = scmp.eq.s32.totalorder %s21, 1
    %p107 = por %p105, %p106
    %p109 = scmp.ne.s32.totalorder %s94, %s108
    %p110 = scmp.eq.s32.totalorder %s21, 0
    %p111 = por %p109, %p110
    %s113 = sadd.s32 %s112, 1
    %p116 = scmp.eq.s32.totalorder %s15, 1
    %p117 = scmp.ne.s32.totalorder %s112, %s114
    %p118 = scmp.eq.s32.totalorder %s15, 0
    %p119 = por %p117, %p118
    %p120 = scmp.ne.s32.totalorder %s112, %s114
    %p121 = scmp.eq.s32.totalorder %s20, 1
    %p122 = por %p120, %p121
    %p123 = scmp.ne.s32.totalorder %s114, %s115
    %p124 = scmp.eq.s32.totalorder %s20, 0
    %p125 = por %p123, %p124
    %p126 = scmp.ne.s32.totalorder %s114, %s115
    %p127 = scmp.eq.s32.totalorder %s21, 1
    %p128 = por %p126, %p127
    %p130 = scmp.ne.s32.totalorder %s115, %s129
    %p131 = scmp.eq.s32.totalorder %s21, 0
    %p132 = por %p130, %p131
    %s134 = sadd.s32 %s133, 1
    %p137 = scmp.eq.s32.totalorder %s15, 1
    %p138 = scmp.ne.s32.totalorder %s133, %s135
    %p139 = scmp.eq.s32.totalorder %s15, 0
    %p140 = por %p138, %p139
    %p141 = scmp.ne.s32.totalorder %s133, %s135
    %p142 = scmp.eq.s32.totalorder %s20, 1
    %p143 = por %p141, %p142
    %p144 = scmp.ne.s32.totalorder %s135, %s136
    %p145 = scmp.eq.s32.totalorder %s20, 0
    %p146 = por %p144, %p145
    %p147 = scmp.ne.s32.totalorder %s135, %s136
    %p148 = scmp.eq.s32.totalorder %s21, 1
    %p149 = por %p147, %p148
    %p151 = scmp.ne.s32.totalorder %s136, %s150
    %p152 = scmp.eq.s32.totalorder %s21, 0
    %p153 = por %p151, %p152
    %s155 = sadd.s32 %s154, 1
    %p158 = scmp.eq.s32.totalorder %s15, 1
    %p159 = scmp.ne.s32.totalorder %s154, %s156
    %p160 = scmp.eq.s32.totalorder %s15, 0
    %p161 = por %p159, %p160
    %p162 = scmp.ne.s32.totalorder %s154, %s156
    %p163 = scmp.eq.s32.totalorder %s20, 1
    %p164 = por %p162, %p163
    %p165 = scmp.ne.s32.totalorder %s156, %s157
    %p166 = scmp.eq.s32.totalorder %s20, 0
    %p167 = por %p165, %p166
    %p168 = scmp.ne.s32.totalorder %s156, %s157
    %p169 = scmp.eq.s32.totalorder %s21, 1
    %p170 = por %p168, %p169
    %p172 = scmp.ne.s32.totalorder %s157, %s171
    %p173 = scmp.eq.s32.totalorder %s21, 0
    %p174 = por %p172, %p173
    %s176 = sadd.s32 %s175, 1
    %p179 = scmp.eq.s32.totalorder %s15, 1
    %p180 = scmp.ne.s32.totalorder %s175, %s177
    %p181 = scmp.eq.s32.totalorder %s15, 0
    %p182 = por %p180, %p181
    %p183 = scmp.ne.s32.totalorder %s175, %s177
    %p184 = scmp.eq.s32.totalorder %s20, 1
    %p185 = por %p183, %p184
    %p186 = scmp.ne.s32.totalorder %s177, %s178
    %p187 = scmp.eq.s32.totalorder %s20, 0
    %p188 = por %p186, %p187
    %p189 = scmp.ne.s32.totalorder %s177, %s178
    %p190 = scmp.eq.s32.totalorder %s21, 1
    %p191 = por %p189, %p190
    %p193 = scmp.ne.s32.totalorder %s178, %s192
    %p194 = scmp.eq.s32.totalorder %s21, 0
    %p195 = por %p193, %p194
    %s197 = sadd.s32 %s196, 1
    %p200 = scmp.eq.s32.totalorder %s15, 1
    %p201 = scmp.ne.s32.totalorder %s196, %s198
    %p202 = scmp.eq.s32.totalorder %s15, 0
    %p203 = por %p201, %p202
    %p204 = scmp.ne.s32.totalorder %s196, %s198
    %p205 = scmp.eq.s32.totalorder %s20, 1
    %p206 = por %p204, %p205
    %p207 = scmp.ne.s32.totalorder %s198, %s199
    %p208 = scmp.eq.s32.totalorder %s20, 0
    %p209 = por %p207, %p208
    %p210 = scmp.ne.s32.totalorder %s198, %s199
    %p211 = scmp.eq.s32.totalorder %s21, 1
    %p212 = por %p210, %p211
    %p214 = scmp.ne.s32.totalorder %s199, %s213
    %p215 = scmp.eq.s32.totalorder %s21, 0
    %p216 = por %p214, %p215
    %s217 = ssub.s32 %s15, %s22
    %p218 = scmp.eq.s32.totalorder %s217, 0
    %s220 = sadd.s32 %s219, 1
    %s221 = scalar_select %p218, %s219, %s220
    %p224 = pneg %p218
    %p225 = scmp.eq.s32.totalorder %s15, 1
    %p226 = por %p224, %p225
    %p227 = scmp.ne.s32.totalorder %s219, %s222
    %p228 = scmp.eq.s32.totalorder %s15, 0
    %p229 = por %p227, %p228
    %p230 = scmp.ne.s32.totalorder %s219, %s222
    %p231 = scmp.eq.s32.totalorder %s20, 1
    %p232 = por %p230, %p231
    %p233 = scmp.ne.s32.totalorder %s222, %s223
    %p234 = scmp.eq.s32.totalorder %s20, 0
    %p235 = por %p233, %p234
    %p236 = scmp.ne.s32.totalorder %s222, %s223
    %p237 = scmp.eq.s32.totalorder %s21, 1
    %p238 = por %p236, %p237
    %p240 = scmp.ne.s32.totalorder %s223, %s239
    %p241 = scmp.eq.s32.totalorder %s21, 0
    %p242 = por %p240, %p241
    %p243 = scmp.le.s32.totalorder 1, %s15
    %p244 = scmp.lt.s32.totalorder %s15, 3
    %p245 = pnand %p243, %p244
    %p246 = pneg %p245
    // Predicated region
    $region9: #{encoder_forward.4} parent=5 // pred_check
      _
    $region10: #{encoder_forward.4} parent=5 // pred_check_branch
      %248 = sbr.rel (%p245) target = $region12
    $region11: #{encoder_forward.4} parent=5 // pred_region
      %s249 = ssub.s32 %s15, 1
      // Predicated region
      $region13: #{encoder_forward.4} parent=11 // pred_check
        %p250 = pneg %p62
      $region14: #{encoder_forward.4} parent=11 // pred_check_branch
        %252 = sbr.rel (%p250) target = $region16
      $region15: #{encoder_forward.4} parent=11 // pred_region
        _
      $region16: #{encoder_forward.4} parent=11 // pred_fallthru
        _
      // Predicated region
      $region17: #{encoder_forward.4} parent=11 // pred_check
        %p253 = pneg %p83
      $region18: #{encoder_forward.4} parent=11 // pred_check_branch
        %255 = sbr.rel (%p253) target = $region20
      $region19: #{encoder_forward.4} parent=11 // pred_region
        _
      $region20: #{encoder_forward.4} parent=11 // pred_fallthru
        _
      // Predicated region
      $region21: #{encoder_forward.4} parent=11 // pred_check
        %p256 = pneg %p104
      $region22: #{encoder_forward.4} parent=11 // pred_check_branch
        %258 = sbr.rel (%p256) target = $region24
      $region23: #{encoder_forward.4} parent=11 // pred_region
        _
      $region24: #{encoder_forward.4} parent=11 // pred_fallthru
        _
      // Predicated region
      $region25: #{encoder_forward.4} parent=11 // pred_check
        %p259 = pneg %p125
      $region26: #{encoder_forward.4} parent=11 // pred_check_branch
        %261 = sbr.rel (%p259) target = $region28
      $region27: #{encoder_forward.4} parent=11 // pred_region
        _
      $region28: #{encoder_forward.4} parent=11 // pred_fallthru
        _
      // Predicated region
      $region29: #{encoder_forward.4} parent=11 // pred_check
        %p262 = pneg %p146
      $region30: #{encoder_forward.4} parent=11 // pred_check_branch
        %264 = sbr.rel (%p262) target = $region32
      $region31: #{encoder_forward.4} parent=11 // pred_region
        _
      $region32: #{encoder_forward.4} parent=11 // pred_fallthru
        _
      // Predicated region
      $region33: #{encoder_forward.4} parent=11 // pred_check
        %p265 = pneg %p167
      $region34: #{encoder_forward.4} parent=11 // pred_check_branch
        %267 = sbr.rel (%p265) target = $region36
      $region35: #{encoder_forward.4} parent=11 // pred_region
        _
      $region36: #{encoder_forward.4} parent=11 // pred_fallthru
        _
      // Predicated region
      $region37: #{encoder_forward.4} parent=11 // pred_check
        %p268 = pneg %p188
      $region38: #{encoder_forward.4} parent=11 // pred_check_branch
        %270 = sbr.rel (%p268) target = $region40
      $region39: #{encoder_forward.4} parent=11 // pred_region
        _
      $region40: #{encoder_forward.4} parent=11 // pred_fallthru
        _
      // Predicated region
      $region41: #{encoder_forward.4} parent=11 // pred_check
        %p271 = pneg %p209
      $region42: #{encoder_forward.4} parent=11 // pred_check_branch
        %273 = sbr.rel (%p271) target = $region44
      $region43: #{encoder_forward.4} parent=11 // pred_region
        _
      $region44: #{encoder_forward.4} parent=11 // pred_fallthru
        _
    $region12: #{encoder_forward.4} parent=5 // pred_fallthru
      _
    %p274 = scmp.lt.s32.totalorder %s15, 2
    // Predicated region
    $region45: #{encoder_forward.4} parent=5 // pred_check
      %p275 = pneg %p274
    $region46: #{encoder_forward.4} parent=5 // pred_check_branch
      %277 = sbr.rel (%p275) target = $region48
    $region47: #{encoder_forward.4} parent=5 // pred_region
      // Predicated region
      $region49: #{encoder_forward.4} parent=47 // pred_check
        %p278 = pneg %p35
      $region50: #{encoder_forward.4} parent=47 // pred_check_branch
        %280 = sbr.rel (%p278) target = $region52
      $region51: #{encoder_forward.4} parent=47 // pred_region
        %p281 = scmp.lt.s32.totalorder %s15, 1
        %s282 = scalar_select %p281, %s15, 1
        %s283 = smul.addr %s282, 3
        %s284 = smul.addr %s283, 8
        %s285 = scalar_lea.vmem %s0, %s284
      $region52: #{encoder_forward.4} parent=47 // pred_fallthru
        _
    $region48: #{encoder_forward.4} parent=5 // pred_fallthru
      _
    %p286 = scmp.le.s32.totalorder 1, %s15
    %p287 = scmp.lt.s32.totalorder %s15, 3
    %p288 = pnand %p286, %p287
    %p289 = pneg %p288
    // Predicated region
    $region53: #{encoder_forward.4} parent=5 // pred_check
      _
    $region54: #{encoder_forward.4} parent=5 // pred_check_branch
      %291 = sbr.rel (%p288) target = $region56
    $region55: #{encoder_forward.4} parent=5 // pred_region
      %s292 = ssub.s32 %s15, 1
      %p293 = scmp.lt.s32.totalorder %s20, 1
      %s294 = scalar_select %p293, %s20, 1
      %s295 = smul.addr %s294, 3
      %s296 = smul.addr %s295, 8
      %s297 = scalar_lea.vmem %s0, %s296
      %p298 = pneg %p41
      %p299 = pneg %p38
      %p300 = pneg %p62
      %p301 = pneg %p59
      %p302 = pneg %p83
      %p303 = pneg %p80
      %p304 = pneg %p104
      %p305 = pneg %p101
      %p306 = pneg %p125
      %p307 = pneg %p122
      %p308 = pneg %p146
      %p309 = pneg %p143
      %p310 = pneg %p167
      %p311 = pneg %p164
      %p312 = pneg %p188
      %p313 = pneg %p185
      %p314 = pneg %p209
      %p315 = pneg %p206
      %p316 = pneg %p235
      %p317 = pneg %p232
      %p318 = scmp.lt.s32.totalorder %s20, 1
      %s319 = scalar_select %p318, %s20, 1
      %s320 = smul.addr %s319, 3
      %s321 = smul.addr %s320, 8
      %s322 = scalar_lea.vmem %s9, %s321
      %p323 = scmp.lt.s32.totalorder %s20, 1
      %s324 = scalar_select %p323, %s20, 1
      %s325 = smul.addr %s324, 3
      %s326 = smul.addr %s325, 8
      %s327 = scalar_lea.vmem %s0, %s326
      %p328 = scmp.lt.s32.totalorder %s20, 1
      %s329 = scalar_select %p328, %s20, 1
      %s330 = smul.addr %s329, 3
      %s331 = smul.addr %s330, 8
      %s332 = scalar_lea.vmem %s9, %s331
      %v334 = vld [vmem:[%s327] sm:$0xff]
      %v335 = vld [vmem:[%s327 + $0x8] sm:$0xff]
      %v336 = vld [vmem:[%s327 + $0x10] sm:$0xff]
      %v337 = vld [vmem:[%s1] sm:$0x1]
      %vm338 = vcmask 261120
      %v339 = vsel %vm338, %v334, 0.0
      %340 = vadd.xlane.f32.xlu0 %v339
      %v341 = vpop.xlane.xlu0 %340
      %v342 = vsel %vm338, %v335, 0.0
      %343 = vadd.xlane.f32.xlu0 %v342
      %v344 = vpop.xlane.xlu0 %343
      %v345 = vsel %vm338, %v336, 0.0
      %346 = vadd.xlane.f32.xlu0 %v345
      %v347 = vpop.xlane.xlu0 %346
      %v348 = vrcp.pop 32.0
      %v349 = vmul.f32 %v341, %v348
      %v350 = vmul.f32 %v344, %v348
      %v351 = vmul.f32 %v347, %v348
      %v352 = vsub.f32 %v334, %v349
      %v353 = vsub.f32 %v335, %v350
      %v354 = vsub.f32 %v336, %v351
      %v355 = vmul.f32 %v352, %v352
      %v356 = vmul.f32 %v353, %v353
      %v357 = vmul.f32 %v354, %v354
      %v358 = vsel %vm338, %v355, 0.0
      %359 = vadd.xlane.f32.xlu0 %v358
      %v360 = vpop.xlane.xlu0 %359
      %v361 = vsel %vm338, %v356, 0.0
      %362 = vadd.xlane.f32.xlu0 %v361
      %v363 = vpop.xlane.xlu0 %362
      %v364 = vsel %vm338, %v357, 0.0
      %365 = vadd.xlane.f32.xlu0 %v364
      %v366 = vpop.xlane.xlu0 %365
      %v367 = vmul.f32 %v360, %v348
      %v368 = vmul.f32 %v363, %v348
      %v369 = vmul.f32 %v366, %v348
      %v370 = vadd.f32 %v367, 1e-05
      %v371 = vadd.f32 %v368, 1e-05
      %v372 = vadd.f32 %v369, 1e-05
      %v373 = vrsqrt.pop %v370
      %v374 = vrsqrt.pop %v371
      %v375 = vrsqrt.pop %v372
      %v376 = vmul.f32 %v352, %v373
      %v377 = vmul.f32 %v353, %v374
      %v378 = vmul.f32 %v354, %v375
      %v380 = vlaneseq
      %v381 = vshrl.u32 %v380, 7
      %v382 = vsub.s32 0, %v381
      %v383 = vrot.slane %v337, %v382
      %v385 = vmul.f32 %v376, %v383
      %v386 = vmul.f32 %v377, %v383
      %v387 = vmul.f32 %v378, %v383
      %v388 = vpack.c.bf16 %v386, %v385
      %v389 = vpack.c.bf16 %v387, %v387
      %v390 = vld [vmem:[%s2] sm:$0xf]
      %v391 = vld [vmem:[%s2 + $0x4] sm:$0xf]
      %v392 = vld [vmem:[%s2 + $0x8] sm:$0xf]
      %v393 = vld [vmem:[%s2 + $0xc] sm:$0xf]
      %v398 = vunpack.c.l.b16 %v390
      %v399 = vunpack.c.l.b16 %v391
      %v400 = vunpack.c.l.b16 %v392
      %v401 = vunpack.c.l.b16 %v393
      %v402 = vpack.c.b16 %v399, %v398
      %v403 = vpack.c.b16 %v401, %v400
      %v407 = vsel %vm338, %v388, 0
      %v410 = vsel %vm338, %v389, 0
      %412 = vmatprep.subr.bf16.mxu0 0
      %413 = vmatpush1.bf16.msra.mxu0 %v402
      %414 = vmatprep.subr.bf16.mxu0 0
      %415 = vmatpush1.bf16.msra.mxu0 %v403
      %416 = vmatprep.subr.bf16.mxu0 0
      %417 = vmatpush1.bf16.msra.mxu0 0
      %418 = vmatprep.subr.bf16.mxu0 0
      %419 = vmatpush1.bf16.msra.mxu0 0
      %420 = vmatprep.subr.bf16.mxu0 0
      %421 = vmatpush1.bf16.msra.mxu0 0
      %422 = vmatprep.subr.bf16.mxu0 0
      %423 = vmatpush1.bf16.msra.mxu0 0
      %424 = vmatprep.subr.bf16.mxu0 0
      %425 = vmatpush1.bf16.msra.mxu0 0
      %426 = vmatprep.subr.bf16.mxu0 0
      %427 = vmatpush1.bf16.msra.mxu0 0
      %428 = vmatprep.subr.bf16.mxu0 0
      %429 = vmatpush1.bf16.msra.mxu0 0
      %430 = vmatprep.subr.bf16.mxu0 0
      %431 = vmatpush1.bf16.msra.mxu0 0
      %432 = vmatprep.subr.bf16.mxu0 0
      %433 = vmatpush1.bf16.msra.mxu0 0
      %434 = vmatprep.subr.bf16.mxu0 0
      %435 = vmatpush1.bf16.msra.mxu0 0
      %436 = vmatprep.subr.bf16.mxu0 0
      %437 = vmatpush1.bf16.msra.mxu0 0
      %438 = vmatprep.subr.bf16.mxu0 0
      %439 = vmatpush1.bf16.msra.mxu0 0
      %440 = vmatprep.subr.bf16.mxu0 0
      %441 = vmatpush1.bf16.msra.mxu0 0
      %442 = vmatprep.subr.bf16.mxu0 0
      %443 = vmatpush1.bf16.msra.mxu0 0
      %444 = vmatprep.mubr.bf16.mxu0 0
      %445 = vmatmul.mubr.bf16.gmra.mrb[0].mxu0 %v407
      %v446 = vpop.f32.mrb[0].mxu0
      %v447 = vadd.f32 0.0, %v446
      %v448 = vpop.f32.mrb[0].mxu0
      %v449 = vpop.f32.mrb[0].mxu0
      %v450 = vadd.f32 0.0, %v449
      %v451 = vpop.f32.mrb[0].mxu0
      %452 = vmatprep.mubr.bf16.mxu0 0
      %453 = vmatmul.mubr.bf16.gmra.mrb[0].mxu0 %v410
      %v454 = vpop.f32.mrb[0].mxu0
      %v455 = vadd.f32 0.0, %v454
      %v456 = vpop.f32.mrb[0].mxu0
      %v457 = vpop.f32.mrb[0].mxu0
      %v458 = vpop.f32.mrb[0].mxu0
      %459 = vdwg.mxu0
      %v460 = vpack.c.bf16 %v450, %v447
      %v461 = vpack.c.bf16 %v455, %v455
      %v462 = vld [vmem:[%s3] sm:$0xf]
      %v463 = vld [vmem:[%s3 + $0x4] sm:$0xf]
      %v464 = vld [vmem:[%s3 + $0x8] sm:$0xf]
      %v465 = vld [vmem:[%s3 + $0xc] sm:$0xf]
      %v470 = vunpack.c.l.b16 %v462
      %v471 = vunpack.c.l.b16 %v463
      %v472 = vunpack.c.l.b16 %v464
      %v473 = vunpack.c.l.b16 %v465
      %v474 = vpack.c.b16 %v471, %v470
      %v475 = vpack.c.b16 %v473, %v472
      %478 = vmatprep.subr.bf16.mxu0 0
      %479 = vmatpush1.bf16.msra.mxu0 %v474
      %480 = vmatprep.subr.bf16.mxu0 0
      %481 = vmatpush1.bf16.msra.mxu0 %v475
      %482 = vmatprep.subr.bf16.mxu0 0
      %483 = vmatpush1.bf16.msra.mxu0 0
      %484 = vmatprep.subr.bf16.mxu0 0
      %485 = vmatpush1.bf16.msra.mxu0 0
      %486 = vmatprep.subr.bf16.mxu0 0
      %487 = vmatpush1.bf16.msra.mxu0 0
      %488 = vmatprep.subr.bf16.mxu0 0
      %489 = vmatpush1.bf16.msra.mxu0 0
      %490 = vmatprep.subr.bf16.mxu0 0
      %491 = vmatpush1.bf16.msra.mxu0 0
      %492 = vmatprep.subr.bf16.mxu0 0
      %493 = vmatpush1.bf16.msra.mxu0 0
      %494 = vmatprep.subr.bf16.mxu0 0
      %495 = vmatpush1.bf16.msra.mxu0 0
      %496 = vmatprep.subr.bf16.mxu0 0
      %497 = vmatpush1.bf16.msra.mxu0 0
      %498 = vmatprep.subr.bf16.mxu0 0
      %499 = vmatpush1.bf16.msra.mxu0 0
      %500 = vmatprep.subr.bf16.mxu0 0
      %501 = vmatpush1.bf16.msra.mxu0 0
      %502 = vmatprep.subr.bf16.mxu0 0
      %503 = vmatpush1.bf16.msra.mxu0 0
      %504 = vmatprep.subr.bf16.mxu0 0
      %505 = vmatpush1.bf16.msra.mxu0 0
      %506 = vmatprep.subr.bf16.mxu0 0
      %507 = vmatpush1.bf16.msra.mxu0 0
      %508 = vmatprep.subr.bf16.mxu0 0
      %509 = vmatpush1.bf16.msra.mxu0 0
      %510 = vmatprep.mubr.bf16.mxu0 0
      %511 = vmatmul.mubr.bf16.gmra.mrb[0].mxu0 %v407
      %v512 = vpop.f32.mrb[0].mxu0
      %v513 = vadd.f32 0.0, %v512
      %v514 = vpop.f32.mrb[0].mxu0
      %v515 = vpop.f32.mrb[0].mxu0
      %v516 = vadd.f32 0.0, %v515
      %v517 = vpop.f32.mrb[0].mxu0
      %518 = vmatprep.mubr.bf16.mxu0 0
      %519 = vmatmul.mubr.bf16.gmra.mrb[0].mxu0 %v410
      %v520 = vpop.f32.mrb[0].mxu0
      %v521 = vadd.f32 0.0, %v520
      %v522 = vpop.f32.mrb[0].mxu0
      %v523 = vpop.f32.mrb[0].mxu0
      %v524 = vpop.f32.mrb[0].mxu0
      %525 = vdwg.mxu0
      %v526 = vpack.c.bf16 %v516, %v513
      %v527 = vpack.c.bf16 %v521, %v521
      %v528 = vld [vmem:[%s4] sm:$0xf]
      %v529 = vld [vmem:[%s4 + $0x4] sm:$0xf]
      %v530 = vld [vmem:[%s4 + $0x8] sm:$0xf]
      %v531 = vld [vmem:[%s4 + $0xc] sm:$0xf]
      %v536 = vunpack.c.l.b16 %v528
      %v537 = vunpack.c.l.b16 %v529
      %v538 = vunpack.c.l.b16 %v530
      %v539 = vunpack.c.l.b16 %v531
      %v540 = vpack.c.b16 %v537, %v536
      %v541 = vpack.c.b16 %v539, %v538
      %544 = vmatprep.subr.bf16.mxu0 0
      %545 = vmatpush1.bf16.msra.mxu0 %v540
      %546 = vmatprep.subr.bf16.mxu0 0
      %547 = vmatpush1.bf16.msra.mxu0 %v541
      %548 = vmatprep.subr.bf16.mxu0 0
      %549 = vmatpush1.bf16.msra.mxu0 0
      %550 = vmatprep.subr.bf16.mxu0 0
      %551 = vmatpush1.bf16.msra.mxu0 0
      %552 = vmatprep.subr.bf16.mxu0 0
      %553 = vmatpush1.bf16.msra.mxu0 0
      %554 = vmatprep.subr.bf16.mxu0 0
      %555 = vmatpush1.bf16.msra.mxu0 0
      %556 = vmatprep.subr.bf16.mxu0 0
      %557 = vmatpush1.bf16.msra.mxu0 0
      %558 = vmatprep.subr.bf16.mxu0 0
      %559 = vmatpush1.bf16.msra.mxu0 0
      %560 = vmatprep.subr.bf16.mxu0 0
      %561 = vmatpush1.bf16.msra.mxu0 0
      %562 = vmatprep.subr.bf16.mxu0 0
      %563 = vmatpush1.bf16.msra.mxu0 0
      %564 = vmatprep.subr.bf16.mxu0 0
      %565 = vmatpush1.bf16.msra.mxu0 0
      %566 = vmatprep.subr.bf16.mxu0 0
      %567 = vmatpush1.bf16.msra.mxu0 0
      %568 = vmatprep.subr.bf16.mxu0 0
      %569 = vmatpush1.bf16.msra.mxu0 0
      %570 = vmatprep.subr.bf16.mxu0 0
      %571 = vmatpush1.bf16.msra.mxu0 0
      %572 = vmatprep.subr.bf16.mxu0 0
      %573 = vmatpush1.bf16.msra.mxu0 0
      %574 = vmatprep.subr.bf16.mxu0 0
      %575 = vmatpush1.bf16.msra.mxu0 0
      %576 = vmatprep.mubr.bf16.mxu0 0
      %577 = vmatmul.mubr.bf16.gmra.mrb[0].mxu0 %v407
      %v578 = vpop.f32.mrb[0].mxu0
      %v579 = vadd.f32 0.0, %v578
      %v580 = vpop.f32.mrb[0].mxu0
      %v581 = vpop.f32.mrb[0].mxu0
      %v582 = vadd.f32 0.0, %v581
      %v583 = vpop.f32.mrb[0].mxu0
      %584 = vmatprep.mubr.bf16.mxu0 0
      %585 = vmatmul.mubr.bf16.gmra.mrb[0].mxu0 %v410
      %v586 = vpop.f32.mrb[0].mxu0
      %v587 = vadd.f32 0.0, %v586
      %v588 = vpop.f32.mrb[0].mxu0
      %v589 = vpop.f32.mrb[0].mxu0
      %v590 = vpop.f32.mrb[0].mxu0
      %591 = vdwg.mxu0
      %v592 = vpack.c.bf16 %v582, %v579
      %v593 = vpack.c.bf16 %v587, %v587
      %v594 = vld [vmem:[%s5] sm:$0xf]
      %v595 = vld [vmem:[%s5 + $0x4] sm:$0xf]
      %v596 = vld [vmem:[%s5 + $0x8] sm:$0xf]
      %v597 = vld [vmem:[%s5 + $0xc] sm:$0xf]
      %v598 = vlaneseq
      %v599 = vand.u32 %v598, 127
      %vm600 = vcmp.lt.s32.totalorder %v599, 17
      %vm601 = vcmask 1043456
      %v604 = vsel %vm601, %v527, 0
      %v606 = vsel %vm601, %v593, 0
      %vm608 = vcmask 64512
      %v610 = vsel %vm608, %v460, 0
      %v613 = vsel %vm608, %v461, 0
      %v616 = vsel %vm608, %v526, 0
      %v618 = vsel %vm608, %v604, 0
      %v620 = vsel %vm608, 0, 0
      %622 = vmatprep.subr.bf16.mxu0 0
      %623 = vmatpush1.bf16.xpose.msra.mxu0 %v616
      %624 = vmatprep.subr.bf16.mxu0 0
      %625 = vmatpush1.bf16.xpose.msra.mxu0 %v618
      %626 = vmatprep.subr.bf16.mxu0 0
      %627 = vmatpush1.bf16.xpose.msra.mxu0 %v620
      %628 = vmatprep.subr.bf16.mxu0 0
      %629 = vmatpush1.bf16.xpose.msra.mxu0 %v620
      %630 = vmatprep.subr.bf16.mxu0 0
      %631 = vmatpush1.bf16.xpose.msra.mxu0 %v620
      %632 = vmatprep.subr.bf16.mxu0 0
      %633 = vmatpush1.bf16.xpose.msra.mxu0 %v620
      %634 = vmatprep.subr.bf16.mxu0 0
      %635 = vmatpush1.bf16.xpose.msra.mxu0 %v620
      %636 = vmatprep.subr.bf16.mxu0 0
      %637 = vmatpush1.bf16.xpose.msra.mxu0 %v620
      %638 = vmatprep.subr.bf16.mxu0 0
      %639 = vmatpush1.bf16.xpose.msra.mxu0 0
      %640 = vmatprep.subr.bf16.mxu0 0
      %641 = vmatpush1.bf16.xpose.msra.mxu0 0
      %642 = vmatprep.subr.bf16.mxu0 0
      %643 = vmatpush1.bf16.xpose.msra.mxu0 0
      %644 = vmatprep.subr.bf16.mxu0 0
      %645 = vmatpush1.bf16.xpose.msra.mxu0 0
      %646 = vmatprep.subr.bf16.mxu0 0
      %647 = vmatpush1.bf16.xpose.msra.mxu0 0
      %648 = vmatprep.subr.bf16.mxu0 0
      %649 = vmatpush1.bf16.xpose.msra.mxu0 0
      %650 = vmatprep.subr.bf16.mxu0 0
      %651 = vmatpush1.bf16.xpose.msra.mxu0 0
      %652 = vmatprep.subr.bf16.mxu0 0
      %653 = vmatpush1.bf16.xpose.msra.mxu0 0
      %654 = vmatprep.mubr.bf16.mxu0 0
      %655 = vmatmul.mubr.bf16.gmra.mrb[0].mxu0 %v610
      %v656 = vpop.f32.mrb[0].mxu0
      %v657 = vadd.f32 0.0, %v656
      %v658 = vpop.f32.mrb[0].mxu0
      %v659 = vpop.f32.mrb[0].mxu0
      %v660 = vadd.f32 0.0, %v659
      %v661 = vpop.f32.mrb[0].mxu0
      %662 = vmatprep.mubr.bf16.mxu0 0
      %663 = vmatmul.mubr.bf16.gmra.mrb[0].mxu0 %v613
      %v664 = vpop.f32.mrb[0].mxu0
      %v665 = vadd.f32 0.0, %v664
      %v666 = vpop.f32.mrb[0].mxu0
      %v667 = vpop.f32.mrb[0].mxu0
      %v668 = vpop.f32.mrb[0].mxu0
      %669 = vdwg.mxu0
      %v670 = vsel %vm600, 1, 0
      %vm671 = vcmp.eq.s32.totalorder %v670, 1
      %v672 = vsel %vm671, %v657, -1e+30
      %v673 = vsel %vm671, %v660, -1e+30
      %v674 = vsel %vm671, %v665, -1e+30
      %675 = vmax.xlane.f32.xlu0 %v672
      %v676 = vpop.xlane.xlu0 %675
      %677 = vmax.xlane.f32.xlu0 %v673
      %v678 = vpop.xlane.xlu0 %677
      %679 = vmax.xlane.f32.xlu0 %v674
      %v680 = vpop.xlane.xlu0 %679
      %v681 = vsub.f32 %v672, %v676
      %v682 = vsub.f32 %v673, %v678
      %v683 = vsub.f32 %v674, %v680
      %v684 = vmul.f32 %v681, 1.442695
      %v685 = vpow.pop %v684
      %v686 = vmul.f32 %v682, 1.442695
      %v687 = vpow.pop %v686
      %v688 = vmul.f32 %v683, 1.442695
      %v689 = vpow.pop %v688
      %690 = vadd.xlane.f32.xlu0 %v685
      %v691 = vpop.xlane.xlu0 %690
      %692 = vadd.xlane.f32.xlu0 %v687
      %v693 = vpop.xlane.xlu0 %692
      %694 = vadd.xlane.f32.xlu0 %v689
      %v695 = vpop.xlane.xlu0 %694
      %v696 = vrcp.pop %v691
      %v697 = vrcp.pop %v693
      %v698 = vrcp.pop %v695
      %v699 = vmul.f32 %v685, %v696
      %v700 = vmul.f32 %v687, %v697
      %v701 = vmul.f32 %v689, %v698
      %v702 = vpack.c.bf16 %v700, %v699
      %v703 = vpack.c.bf16 %v701, %v701
      %704 = vmatprep.subr.bf16.mxu0 0
      %705 = vmatpush1.bf16.msra.mxu0 %v592
      %706 = vmatprep.subr.bf16.mxu0 0
      %707 = vmatpush1.bf16.msra.mxu0 %v606
      %708 = vmatprep.subr.bf16.mxu0 0
      %709 = vmatpush1.bf16.msra.mxu0 0
      %710 = vmatprep.subr.bf16.mxu0 0
      %711 = vmatpush1.bf16.msra.mxu0 0
      %712 = vmatprep.subr.bf16.mxu0 0
      %713 = vmatpush1.bf16.msra.mxu0 0
      %714 = vmatprep.subr.bf16.mxu0 0
      %715 = vmatpush1.bf16.msra.mxu0 0
      %716 = vmatprep.subr.bf16.mxu0 0
      %717 = vmatpush1.bf16.msra.mxu0 0
      %718 = vmatprep.subr.bf16.mxu0 0
      %719 = vmatpush1.bf16.msra.mxu0 0
      %720 = vmatprep.subr.bf16.mxu0 0
      %721 = vmatpush1.bf16.msra.mxu0 0
      %722 = vmatprep.subr.bf16.mxu0 0
      %723 = vmatpush1.bf16.msra.mxu0 0
      %724 = vmatprep.subr.bf16.mxu0 0
      %725 = vmatpush1.bf16.msra.mxu0 0
      %726 = vmatprep.subr.bf16.mxu0 0
      %727 = vmatpush1.bf16.msra.mxu0 0
      %728 = vmatprep.subr.bf16.mxu0 0
      %729 = vmatpush1.bf16.msra.mxu0 0
      %730 = vmatprep.subr.bf16.mxu0 0
      %731 = vmatpush1.bf16.msra.mxu0 0
      %732 = vmatprep.subr.bf16.mxu0 0
      %733 = vmatpush1.bf16.msra.mxu0 0
      %734 = vmatprep.subr.bf16.mxu0 0
      %735 = vmatpush1.bf16.msra.mxu0 0
      %736 = vmatprep.mubr.bf16.mxu0 0
      %737 = vmatmul.mubr.bf16.gmra.mrb[0].mxu0 %v702
      %v738 = vpop.f32.mrb[0].mxu0
      %v739 = vadd.f32 0.0, %v738
      %v740 = vpop.f32.mrb[0].mxu0
      %v741 = vpop.f32.mrb[0].mxu0
      %v742 = vadd.f32 0.0, %v741
      %v743 = vpop.f32.mrb[0].mxu0
      %744 = vmatprep.mubr.bf16.mxu0 0
      %745 = vmatmul.mubr.bf16.gmra.mrb[0].mxu0 %v703
      %v746 = vpop.f32.mrb[0].mxu0
      %v747 = vadd.f32 0.0, %v746
      %v748 = vpop.f32.mrb[0].mxu0
      %v749 = vpop.f32.mrb[0].mxu0
      %v750 = vpop.f32.mrb[0].mxu0
      %751 = vdwg.mxu0
      %v752 = vpack.c.bf16 %v742, %v739
      %v753 = vpack.c.bf16 %v747, %v747
      %v755 = vsel %vm608, %v752, 0
      %v758 = vsel %vm608, %v753, 0
      %v761 = vsel %vm601, %v594, 0
      %763 = vmatprep.subr.bf16.mxu0 0
      %764 = vmatpush1.bf16.msra.mxu0 %v761
      %765 = vmatprep.subr.bf16.mxu0 0
      %766 = vmatpush1.bf16.msra.mxu0 0
      %767 = vmatprep.subr.bf16.mxu0 0
      %768 = vmatpush1.bf16.msra.mxu0 0
      %769 = vmatprep.subr.bf16.mxu0 0
      %770 = vmatpush1.bf16.msra.mxu0 0
      %771 = vmatprep.subr.bf16.mxu0 0
      %772 = vmatpush1.bf16.msra.mxu0 0
      %773 = vmatprep.subr.bf16.mxu0 0
      %774 = vmatpush1.bf16.msra.mxu0 0
      %775 = vmatprep.subr.bf16.mxu0 0
      %776 = vmatpush1.bf16.msra.mxu0 0
      %777 = vmatprep.subr.bf16.mxu0 0
      %778 = vmatpush1.bf16.msra.mxu0 0
      %779 = vmatprep.subr.bf16.mxu0 0
      %780 = vmatpush1.bf16.msra.mxu0 0
      %781 = vmatprep.subr.bf16.mxu0 0
      %782 = vmatpush1.bf16.msra.mxu0 0
      %783 = vmatprep.subr.bf16.mxu0 0
      %784 = vmatpush1.bf16.msra.mxu0 0
      %785 = vmatprep.subr.bf16.mxu0 0
      %786 = vmatpush1.bf16.msra.mxu0 0
      %787 = vmatprep.subr.bf16.mxu0 0
      %788 = vmatpush1.bf16.msra.mxu0 0
      %789 = vmatprep.subr.bf16.mxu0 0
      %790 = vmatpush1.bf16.msra.mxu0 0
      %791 = vmatprep.subr.bf16.mxu0 0
      %792 = vmatpush1.bf16.msra.mxu0 0
      %793 = vmatprep.subr.bf16.mxu0 0
      %794 = vmatpush1.bf16.msra.mxu0 0
      %795 = vmatprep.mubr.bf16.mxu0 0
      %796 = vmatmul.mubr.bf16.gmra.mrb[0].mxu0 %v755
      %v797 = vpop.f32.mrb[0].mxu0
      %v798 = vadd.f32 0.0, %v797
      %v799 = vpop.f32.mrb[0].mxu0
      %v800 = vpop.f32.mrb[0].mxu0
      %v801 = vadd.f32 0.0, %v800
      %v802 = vpop.f32.mrb[0].mxu0
      %803 = vmatprep.mubr.bf16.mxu0 0
      %804 = vmatmul.mubr.bf16.gmra.mrb[0].mxu0 %v758
      %v805 = vpop.f32.mrb[0].mxu0
      %v806 = vadd.f32 0.0, %v805
      %v807 = vpop.f32.mrb[0].mxu0
      %v808 = vpop.f32.mrb[0].mxu0
      %v809 = vpop.f32.mrb[0].mxu0
      %810 = vdwg.mxu0
      %v811 = vadd.f32 %v334, %v798
      %v812 = vadd.f32 %v335, %v801
      %v813 = vadd.f32 %v336, %v806
      %816 = vrot.lane.b32.xlu0 %v460, 120
      %v817 = vpop.permute.xlu0 %816
      %818 = vrot.lane.b32.xlu0 %v461, 120
      %v819 = vpop.permute.xlu0 %818
      %823 = vrot.lane.b32.xlu0 %v526, 120
      %v824 = vpop.permute.xlu0 %823
      %825 = vrot.lane.b32.xlu0 %v604, 120
      %v826 = vpop.permute.xlu0 %825
      %827 = vrot.lane.b32.xlu0 0, 120
      %v828 = vpop.permute.xlu0 %827
      %v830 = vsel %vm608, %v817, 0
      %v833 = vsel %vm608, %v819, 0
      %v836 = vsel %vm608, %v824, 0
      %v839 = vsel %vm608, %v826, 0
      %v842 = vsel %vm608, %v828, 0
      %844 = vmatprep.subr.bf16.mxu0 0
      %845 = vmatpush1.bf16.xpose.msra.mxu0 %v836
      %846 = vmatprep.subr.bf16.mxu0 0
      %847 = vmatpush1.bf16.xpose.msra.mxu0 %v839
      %848 = vmatprep.subr.bf16.mxu0 0
      %849 = vmatpush1.bf16.xpose.msra.mxu0 %v842
      %850 = vmatprep.subr.bf16.mxu0 0
      %851 = vmatpush1.bf16.xpose.msra.mxu0 %v842
      %852 = vmatprep.subr.bf16.mxu0 0
      %853 = vmatpush1.bf16.xpose.msra.mxu0 %v842
      %854 = vmatprep.subr.bf16.mxu0 0
      %855 = vmatpush1.bf16.xpose.msra.mxu0 %v842
      %856 = vmatprep.subr.bf16.mxu0 0
      %857 = vmatpush1.bf16.xpose.msra.mxu0 %v842
      %858 = vmatprep.subr.bf16.mxu0 0
      %859 = vmatpush1.bf16.xpose.msra.mxu0 %v842
      %860 = vmatprep.subr.bf16.mxu0 0
      %861 = vmatpush1.bf16.xpose.msra.mxu0 0
      %862 = vmatprep.subr.bf16.mxu0 0
      %863 = vmatpush1.bf16.xpose.msra.mxu0 0
      %864 = vmatprep.subr.bf16.mxu0 0
      %865 = vmatpush1.bf16.xpose.msra.mxu0 0
      %866 = vmatprep.subr.bf16.mxu0 0
      %867 = vmatpush1.bf16.xpose.msra.mxu0 0
      %868 = vmatprep.subr.bf16.mxu0 0
      %869 = vmatpush1.bf16.xpose.msra.mxu0 0
      %870 = vmatprep.subr.bf16.mxu0 0
      %871 = vmatpush1.bf16.xpose.msra.mxu0 0
      %872 = vmatprep.subr.bf16.mxu0 0
      %873 = vmatpush1.bf16.xpose.msra.mxu0 0
      %874 = vmatprep.subr.bf16.mxu0 0
      %875 = vmatpush1.bf16.xpose.msra.mxu0 0
      %876 = vmatprep.mubr.bf16.mxu0 0
      %877 = vmatmul.mubr.bf16.gmra.mrb[0].mxu0 %v830
      %v878 = vpop.f32.mrb[0].mxu0
      %v879 = vadd.f32 0.0, %v878
      %v880 = vpop.f32.mrb[0].mxu0
      %v881 = vpop.f32.mrb[0].mxu0
      %v882 = vadd.f32 0.0, %v881
      %v883 = vpop.f32.mrb[0].mxu0
      %884 = vmatprep.mubr.bf16.mxu0 0
      %885 = vmatmul.mubr.bf16.gmra.mrb[0].mxu0 %v833
      %v886 = vpop.f32.mrb[0].mxu0
      %v887 = vadd.f32 0.0, %v886
      %v888 = vpop.f32.mrb[0].mxu0
      %v889 = vpop.f32.mrb[0].mxu0
      %v890 = vpop.f32.mrb[0].mxu0
      %891 = vdwg.mxu0
      %v892 = vsel %vm671, %v879, -1e+30
      %v893 = vsel %vm671, %v882, -1e+30
      %v894 = vsel %vm671, %v887, -1e+30
      %895 = vmax.xlane.f32.xlu0 %v892
      %v896 = vpop.xlane.xlu0 %895
      %897 = vmax.xlane.f32.xlu0 %v893
      %v898 = vpop.xlane.xlu0 %897
      %899 = vmax.xlane.f32.xlu0 %v894
      %v900 = vpop.xlane.xlu0 %899
      %v901 = vsub.f32 %v892, %v896
      %v902 = vsub.f32 %v893, %v898
      %v903 = vsub.f32 %v894, %v900
      %v904 = vmul.f32 %v901, 1.442695
      %v905 = vpow.pop %v904
      %v906 = vmul.f32 %v902, 1.442695
      %v907 = vpow.pop %v906
      %v908 = vmul.f32 %v903, 1.442695
      %v909 = vpow.pop %v908
      %910 = vadd.xlane.f32.xlu0 %v905
      %v911 = vpop.xlane.xlu0 %910
      %912 = vadd.xlane.f32.xlu0 %v907
      %v913 = vpop.xlane.xlu0 %912
      %914 = vadd.xlane.f32.xlu0 %v909
      %v915 = vpop.xlane.xlu0 %914
      %v916 = vrcp.pop %v911
      %v917 = vrcp.pop %v913
      %v918 = vrcp.pop %v915
      %v919 = vmul.f32 %v905, %v916
      %v920 = vmul.f32 %v907, %v917
      %v921 = vmul.f32 %v909, %v918
      %v922 = vpack.c.bf16 %v920, %v919
      %v923 = vpack.c.bf16 %v921, %v921
      %926 = vrot.lane.b32.xlu0 %v592, 120
      %v927 = vpop.permute.xlu0 %926
      %928 = vrot.lane.b32.xlu0 %v606, 120
      %v929 = vpop.permute.xlu0 %928
      %933 = vmatprep.subr.bf16.mxu0 0
      %934 = vmatpush1.bf16.msra.mxu0 %v927
      %935 = vmatprep.subr.bf16.mxu0 0
      %936 = vmatpush1.bf16.msra.mxu0 %v929
      %937 = vmatprep.subr.bf16.mxu0 0
      %938 = vmatpush1.bf16.msra.mxu0 %v828
      %939 = vmatprep.subr.bf16.mxu0 0
      %940 = vmatpush1.bf16.msra.mxu0 %v828
      %941 = vmatprep.subr.bf16.mxu0 0
      %942 = vmatpush1.bf16.msra.mxu0 %v828
      %943 = vmatprep.subr.bf16.mxu0 0
      %944 = vmatpush1.bf16.msra.mxu0 %v828
      %945 = vmatprep.subr.bf16.mxu0 0
      %946 = vmatpush1.bf16.msra.mxu0 %v828
      %947 = vmatprep.subr.bf16.mxu0 0
      %948 = vmatpush1.bf16.msra.mxu0 %v828
      %949 = vmatprep.subr.bf16.mxu0 0
      %950 = vmatpush1.bf16.msra.mxu0 0
      %951 = vmatprep.subr.bf16.mxu0 0
      %952 = vmatpush1.bf16.msra.mxu0 0
      %953 = vmatprep.subr.bf16.mxu0 0
      %954 = vmatpush1.bf16.msra.mxu0 0
      %955 = vmatprep.subr.bf16.mxu0 0
      %956 = vmatpush1.bf16.msra.mxu0 0
      %957 = vmatprep.subr.bf16.mxu0 0
      %958 = vmatpush1.bf16.msra.mxu0 0
      %959 = vmatprep.subr.bf16.mxu0 0
      %960 = vmatpush1.bf16.msra.mxu0 0
      %961 = vmatprep.subr.bf16.mxu0 0
      %962 = vmatpush1.bf16.msra.mxu0 0
      %963 = vmatprep.subr.bf16.mxu0 0
      %964 = vmatpush1.bf16.msra.mxu0 0
      %965 = vmatprep.mubr.bf16.mxu0 0
      %966 = vmatmul.mubr.bf16.gmra.mrb[0].mxu0 %v922
      %v967 = vpop.f32.mrb[0].mxu0
      %v968 = vadd.f32 0.0, %v967
      %v969 = vpop.f32.mrb[0].mxu0
      %v970 = vpop.f32.mrb[0].mxu0
      %v971 = vadd.f32 0.0, %v970
      %v972 = vpop.f32.mrb[0].mxu0
      %973 = vmatprep.mubr.bf16.mxu0 0
      %974 = vmatmul.mubr.bf16.gmra.mrb[0].mxu0 %v923
      %v975 = vpop.f32.mrb[0].mxu0
      %v976 = vadd.f32 0.0, %v975
      %v977 = vpop.f32.mrb[0].mxu0
      %v978 = vpop.f32.mrb[0].mxu0
      %v979 = vpop.f32.mrb[0].mxu0
      %980 = vdwg.mxu0
      %v981 = vpack.c.bf16 %v971, %v968
      %v982 = vpack.c.bf16 %v976, %v976
      %v984 = vsel %vm608, %v981, 0
      %v987 = vsel %vm608, %v982, 0
      %v990 = vsel %vm601, %v595, 0
      %992 = vmatprep.subr.bf16.mxu0 0
      %993 = vmatpush1.bf16.msra.mxu0 %v990
      %994 = vmatprep.subr.bf16.mxu0 0
      %995 = vmatpush1.bf16.msra.mxu0 0
      %996 = vmatprep.subr.bf16.mxu0 0
      %997 = vmatpush1.bf16.msra.mxu0 0
      %998 = vmatprep.subr.bf16.mxu0 0
      %999 = vmatpush1.bf16.msra.mxu0 0
      %1000 = vmatprep.subr.bf16.mxu0 0
      %1001 = vmatpush1.bf16.msra.mxu0 0
      %1002 = vmatprep.subr.bf16.mxu0 0
      %1003 = vmatpush1.bf16.msra.mxu0 0
      %1004 = vmatprep.subr.bf16.mxu0 0
      %1005 = vmatpush1.bf16.msra.mxu0 0
      %1006 = vmatprep.subr.bf16.mxu0 0
      %1007 = vmatpush1.bf16.msra.mxu0 0
      %1008 = vmatprep.subr.bf16.mxu0 0
      %1009 = vmatpush1.bf16.msra.mxu0 0
      %1010 = vmatprep.subr.bf16.mxu0 0
      %1011 = vmatpush1.bf16.msra.mxu0 0
      %1012 = vmatprep.subr.bf16.mxu0 0
      %1013 = vmatpush1.bf16.msra.mxu0 0
      %1014 = vmatprep.subr.bf16.mxu0 0
      %1015 = vmatpush1.bf16.msra.mxu0 0
      %1016 = vmatprep.subr.bf16.mxu0 0
      %1017 = vmatpush1.bf16.msra.mxu0 0
      %1018 = vmatprep.subr.bf16.mxu0 0
      %1019 = vmatpush1.bf16.msra.mxu0 0
      %1020 = vmatprep.subr.bf16.mxu0 0
      %1021 = vmatpush1.bf16.msra.mxu0 0
      %1022 = vmatprep.subr.bf16.mxu0 0
      %1023 = vmatpush1.bf16.msra.mxu0 0
      %1024 = vmatprep.mubr.bf16.mxu0 0
      %1025 = vmatmul.mubr.bf16.gmra.mrb[0].mxu0 %v984
      %v1026 = vpop.f32.mrb[0].mxu0
      %v1027 = vadd.f32 0.0, %v1026
      %v1028 = vpop.f32.mrb[0].mxu0
      %v1029 = vpop.f32.mrb[0].mxu0
      %v1030 = vadd.f32 0.0, %v1029
      %v1031 = vpop.f32.mrb[0].mxu0
      %1032 = vmatprep.mubr.bf16.mxu0 0
      %1033 = vmatmul.mubr.bf16.gmra.mrb[0].mxu0 %v987
      %v1034 = vpop.f32.mrb[0].mxu0
      %v1035 = vadd.f32 0.0, %v1034
      %v1036 = vpop.f32.mrb[0].mxu0
      %v1037 = vpop.f32.mrb[0].mxu0
      %v1038 = vpop.f32.mrb[0].mxu0
      %1039 = vdwg.mxu0
      %v1040 = vadd.f32 %v811, %v1027
      %v1041 = vadd.f32 %v812, %v1030
      %v1042 = vadd.f32 %v813, %v1035
      %1043 = vrot.lane.b32.xlu0 %v460, 112
      %v1044 = vpop.permute.xlu0 %1043
      %1045 = vrot.lane.b32.xlu0 %v461, 112
      %v1046 = vpop.permute.xlu0 %1045
      %1047 = vrot.lane.b32.xlu0 %v526, 112
      %v1048 = vpop.permute.xlu0 %1047
      %1049 = vrot.lane.b32.xlu0 %v604, 112
      %v1050 = vpop.permute.xlu0 %1049
      %1051 = vrot.lane.b32.xlu0 0, 112
      %v1052 = vpop.permute.xlu0 %1051
      %v1054 = vsel %vm608, %v1044, 0
      %v1057 = vsel %vm608, %v1046, 0
      %v1060 = vsel %vm608, %v1048, 0
      %v1063 = vsel %vm608, %v1050, 0
      %v1066 = vsel %vm608, %v1052, 0
      %1068 = vmatprep.subr.bf16.mxu0 0
      %1069 = vmatpush1.bf16.xpose.msra.mxu0 %v1060
      %1070 = vmatprep.subr.bf16.mxu0 0
      %1071 = vmatpush1.bf16.xpose.msra.mxu0 %v1063
      %1072 = vmatprep.subr.bf16.mxu0 0
      %1073 = vmatpush1.bf16.xpose.msra.mxu0 %v1066
      %1074 = vmatprep.subr.bf16.mxu0 0
      %1075 = vmatpush1.bf16.xpose.msra.mxu0 %v1066
      %1076 = vmatprep.subr.bf16.mxu0 0
      %1077 = vmatpush1.bf16.xpose.msra.mxu0 %v1066
      %1078 = vmatprep.subr.bf16.mxu0 0
      %1079 = vmatpush1.bf16.xpose.msra.mxu0 %v1066
      %1080 = vmatprep.subr.bf16.mxu0 0
      %1081 = vmatpush1.bf16.xpose.msra.mxu0 %v1066
      %1082 = vmatprep.subr.bf16.mxu0 0
      %1083 = vmatpush1.bf16.xpose.msra.mxu0 %v1066
      %1084 = vmatprep.subr.bf16.mxu0 0
      %1085 = vmatpush1.bf16.xpose.msra.mxu0 0
      %1086 = vmatprep.subr.bf16.mxu0 0
      %1087 = vmatpush1.bf16.xpose.msra.mxu0 0
      %1088 = vmatprep.subr.bf16.mxu0 0
      %1089 = vmatpush1.bf16.xpose.msra.mxu0 0
      %1090 = vmatprep.subr.bf16.mxu0 0
      %1091 = vmatpush1.bf16.xpose.msra.mxu0 0
      %1092 = vmatprep.subr.bf16.mxu0 0
      %1093 = vmatpush1.bf16.xpose.msra.mxu0 0
      %1094 = vmatprep.subr.bf16.mxu0 0
      %1095 = vmatpush1.bf16.xpose.msra.mxu0 0
      %1096 = vmatprep.subr.bf16.mxu0 0
      %1097 = vmatpush1.bf16.xpose.msra.mxu0 0
      %1098 = vmatprep.subr.bf16.mxu0 0
      %1099 = vmatpush1.bf16.xpose.msra.mxu0 0
      %1100 = vmatprep.mubr.bf16.mxu0 0
      %1101 = vmatmul.mubr.bf16.gmra.mrb[0].mxu0 %v1054
      %v1102 = vpop.f32.mrb[0].mxu0
      %v1103 = vadd.f32 0.0, %v1102
      %v1104 = vpop.f32.mrb[0].mxu0
      %v1105 = vpop.f32.mrb[0].mxu0
      %v1106 = vadd.f32 0.0, %v1105
      %v1107 = vpop.f32.mrb[0].mxu0
      %1108 = vmatprep.mubr.bf16.mxu0 0
      %1109 = vmatmul.mubr.bf16.gmra.mrb[0].mxu0 %v1057
      %v1110 = vpop.f32.mrb[0].mxu0
      %v1111 = vadd.f32 0.0, %v1110
      %v1112 = vpop.f32.mrb[0].mxu0
      %v1113 = vpop.f32.mrb[0].mxu0
      %v1114 = vpop.f32.mrb[0].mxu0
      %1115 = vdwg.mxu0
      %v1116 = vsel %vm671, %v1103, -1e+30
      %v1117 = vsel %vm671, %v1106, -1e+30
      %v1118 = vsel %vm671, %v1111, -1e+30
      %1119 = vmax.xlane.f32.xlu0 %v1116
      %v1120 = vpop.xlane.xlu0 %1119
      %1121 = vmax.xlane.f32.xlu0 %v1117
      %v1122 = vpop.xlane.xlu0 %1121
      %1123 = vmax.xlane.f32.xlu0 %v1118
      %v1124 = vpop.xlane.xlu0 %1123
      %v1125 = vsub.f32 %v1116, %v1120
      %v1126 = vsub.f32 %v1117, %v1122
      %v1127 = vsub.f32 %v1118, %v1124
      %v1128 = vmul.f32 %v1125, 1.442695
      %v1129 = vpow.pop %v1128
      %v1130 = vmul.f32 %v1126, 1.442695
      %v1131 = vpow.pop %v1130
      %v1132 = vmul.f32 %v1127, 1.442695
      %v1133 = vpow.pop %v1132
      %1134 = vadd.xlane.f32.xlu0 %v1129
      %v1135 = vpop.xlane.xlu0 %1134
      %1136 = vadd.xlane.f32.xlu0 %v1131
      %v1137 = vpop.xlane.xlu0 %1136
      %1138 = vadd.xlane.f32.xlu0 %v1133
      %v1139 = vpop.xlane.xlu0 %1138
      %v1140 = vrcp.pop %v1135
      %v1141 = vrcp.pop %v1137
      %v1142 = vrcp.pop %v1139
      %v1143 = vmul.f32 %v1129, %v1140
      %v1144 = vmul.f32 %v1131, %v1141
      %v1145 = vmul.f32 %v1133, %v1142
      %v1146 = vpack.c.bf16 %v1144, %v1143
      %v1147 = vpack.c.bf16 %v1145, %v1145
      %1148 = vrot.lane.b32.xlu0 %v592, 112
      %v1149 = vpop.permute.xlu0 %1148
      %1150 = vrot.lane.b32.xlu0 %v606, 112
      %v1151 = vpop.permute.xlu0 %1150
      %1155 = vmatprep.subr.bf16.mxu0 0
      %1156 = vmatpush1.bf16.msra.mxu0 %v1149
      %1157 = vmatprep.subr.bf16.mxu0 0
      %1158 = vmatpush1.bf16.msra.mxu0 %v1151
      %1159 = vmatprep.subr.bf16.mxu0 0
      %1160 = vmatpush1.bf16.msra.mxu0 %v1052
      %1161 = vmatprep.subr.bf16.mxu0 0
      %1162 = vmatpush1.bf16.msra.mxu0 %v1052
      %1163 = vmatprep.subr.bf16.mxu0 0
      %1164 = vmatpush1.bf16.msra.mxu0 %v1052
      %1165 = vmatprep.subr.bf16.mxu0 0
      %1166 = vmatpush1.bf16.msra.mxu0 %v1052
      %1167 = vmatprep.subr.bf16.mxu0 0
      %1168 = vmatpush1.bf16.msra.mxu0 %v1052
      %1169 = vmatprep.subr.bf16.mxu0 0
      %1170 = vmatpush1.bf16.msra.mxu0 %v1052
      %1171 = vmatprep.subr.bf16.mxu0 0
      %1172 = vmatpush1.bf16.msra.mxu0 0
      %1173 = vmatprep.subr.bf16.mxu0 0
      %1174 = vmatpush1.bf16.msra.mxu0 0
      %1175 = vmatprep.subr.bf16.mxu0 0
      %1176 = vmatpush1.bf16.msra.mxu0 0
      %1177 = vmatprep.subr.bf16.mxu0 0
      %1178 = vmatpush1.bf16.msra.mxu0 0
      %1179 = vmatprep.subr.bf16.mxu0 0
      %1180 = vmatpush1.bf16.msra.mxu0 0
      %1181 = vmatprep.subr.bf16.mxu0 0
      %1182 = vmatpush1.bf16.msra.mxu0 0
      %1183 = vmatprep.subr.bf16.mxu0 0
      %1184 = vmatpush1.bf16.msra.mxu0 0
      %1185 = vmatprep.subr.bf16.mxu0 0
      %1186 = vmatpush1.bf16.msra.mxu0 0
      %1187 = vmatprep.mubr.bf16.mxu0 0
      %1188 = vmatmul.mubr.bf16.gmra.mrb[0].mxu0 %v1146
      %v1189 = vpop.f32.mrb[0].mxu0
      %v1190 = vadd.f32 0.0, %v1189
      %v1191 = vpop.f32.mrb[0].mxu0
      %v1192 = vpop.f32.mrb[0].mxu0
      %v1193 = vadd.f32 0.0, %v1192
      %v1194 = vpop.f32.mrb[0].mxu0
      %1195 = vmatprep.mubr.bf16.mxu0 0
      %1196 = vmatmul.mubr.bf16.gmra.mrb[0].mxu0 %v1147
      %v1197 = vpop.f32.mrb[0].mxu0
      %v1198 = vadd.f32 0.0, %v1197
      %v1199 = vpop.f32.mrb[0].mxu0
      %v1200 = vpop.f32.mrb[0].mxu0
      %v1201 = vpop.f32.mrb[0].mxu0
      %1202 = vdwg.mxu0
      %v1203 = vpack.c.bf16 %v1193, %v1190
      %v1204 = vpack.c.bf16 %v1198, %v1198
      %v1206 = vsel %vm608, %v1203, 0
      %v1209 = vsel %vm608, %v1204, 0
      %v1212 = vsel %vm601, %v596, 0
      %1214 = vmatprep.subr.bf16.mxu0 0
      %1215 = vmatpush1.bf16.msra.mxu0 %v1212
      %1216 = vmatprep.subr.bf16.mxu0 0
      %1217 = vmatpush1.bf16.msra.mxu0 0
      %1218 = vmatprep.subr.bf16.mxu0 0
      %1219 = vmatpush1.bf16.msra.mxu0 0
      %1220 = vmatprep.subr.bf16.mxu0 0
      %1221 = vmatpush1.bf16.msra.mxu0 0
      %1222 = vmatprep.subr.bf16.mxu0 0
      %1223 = vmatpush1.bf16.msra.mxu0 0
      %1224 = vmatprep.subr.bf16.mxu0 0
      %1225 = vmatpush1.bf16.msra.mxu0 0
      %1226 = vmatprep.subr.bf16.mxu0 0
      %1227 = vmatpush1.bf16.msra.mxu0 0
      %1228 = vmatprep.subr.bf16.mxu0 0
      %1229 = vmatpush1.bf16.msra.mxu0 0
      %1230 = vmatprep.subr.bf16.mxu0 0
      %1231 = vmatpush1.bf16.msra.mxu0 0
      %1232 = vmatprep.subr.bf16.mxu0 0
      %1233 = vmatpush1.bf16.msra.mxu0 0
      %1234 = vmatprep.subr.bf16.mxu0 0
      %1235 = vmatpush1.bf16.msra.mxu0 0
      %1236 = vmatprep.subr.bf16.mxu0 0
      %1237 = vmatpush1.bf16.msra.mxu0 0
      %1238 = vmatprep.subr.bf16.mxu0 0
      %1239 = vmatpush1.bf16.msra.mxu0 0
      %1240 = vmatprep.subr.bf16.mxu0 0
      %1241 = vmatpush1.bf16.msra.mxu0 0
      %1242 = vmatprep.subr.bf16.mxu0 0
      %1243 = vmatpush1.bf16.msra.mxu0 0
      %1244 = vmatprep.subr.bf16.mxu0 0
      %1245 = vmatpush1.bf16.msra.mxu0 0
      %1246 = vmatprep.mubr.bf16.mxu0 0
      %1247 = vmatmul.mubr.bf16.gmra.mrb[0].mxu0 %v1206
      %v1248 = vpop.f32.mrb[0].mxu0
      %v1249 = vadd.f32 0.0, %v1248
      %v1250 = vpop.f32.mrb[0].mxu0
      %v1251 = vpop.f32.mrb[0].mxu0
      %v1252 = vadd.f32 0.0, %v1251
      %v1253 = vpop.f32.mrb[0].mxu0
      %1254 = vmatprep.mubr.bf16.mxu0 0
      %1255 = vmatmul.mubr.bf16.gmra.mrb[0].mxu0 %v1209
      %v1256 = vpop.f32.mrb[0].mxu0
      %v1257 = vadd.f32 0.0, %v1256
      %v1258 = vpop.f32.mrb[0].mxu0
      %v1259 = vpop.f32.mrb[0].mxu0
      %v1260 = vpop.f32.mrb[0].mxu0
      %1261 = vdwg.mxu0
      %v1262 = vadd.f32 %v1040, %v1249
      %v1263 = vadd.f32 %v1041, %v1252
      %v1264 = vadd.f32 %v1042, %v1257
      %1265 = vrot.lane.b32.xlu0 %v460, 104
      %v1266 = vpop.permute.xlu0 %1265
      %1267 = vrot.lane.b32.xlu0 %v461, 104
      %v1268 = vpop.permute.xlu0 %1267
      %1269 = vrot.lane.b32.xlu0 %v526, 104
      %v1270 = vpop.permute.xlu0 %1269
      %1271 = vrot.lane.b32.xlu0 %v604, 104
      %v1272 = vpop.permute.xlu0 %1271
      %1273 = vrot.lane.b32.xlu0 0, 104
      %v1274 = vpop.permute.xlu0 %1273
      %v1276 = vsel %vm608, %v1266, 0
      %v1279 = vsel %vm608, %v1268, 0
      %v1282 = vsel %vm608, %v1270, 0
      %v1285 = vsel %vm608, %v1272, 0
      %v1288 = vsel %vm608, %v1274, 0
      %1290 = vmatprep.subr.bf16.mxu0 0
      %1291 = vmatpush1.bf16.xpose.msra.mxu0 %v1282
      %1292 = vmatprep.subr.bf16.mxu0 0
      %1293 = vmatpush1.bf16.xpose.msra.mxu0 %v1285
      %1294 = vmatprep.subr.bf16.mxu0 0
      %1295 = vmatpush1.bf16.xpose.msra.mxu0 %v1288
      %1296 = vmatprep.subr.bf16.mxu0 0
      %1297 = vmatpush1.bf16.xpose.msra.mxu0 %v1288
      %1298 = vmatprep.subr.bf16.mxu0 0
      %1299 = vmatpush1.bf16.xpose.msra.mxu0 %v1288
      %1300 = vmatprep.subr.bf16.mxu0 0
      %1301 = vmatpush1.bf16.xpose.msra.mxu0 %v1288
      %1302 = vmatprep.subr.bf16.mxu0 0
      %1303 = vmatpush1.bf16.xpose.msra.mxu0 %v1288
      %1304 = vmatprep.subr.bf16.mxu0 0
      %1305 = vmatpush1.bf16.xpose.msra.mxu0 %v1288
      %1306 = vmatprep.subr.bf16.mxu0 0
      %1307 = vmatpush1.bf16.xpose.msra.mxu0 0
      %1308 = vmatprep.subr.bf16.mxu0 0
      %1309 = vmatpush1.bf16.xpose.msra.mxu0 0
      %1310 = vmatprep.subr.bf16.mxu0 0
      %1311 = vmatpush1.bf16.xpose.msra.mxu0 0
      %1312 = vmatprep.subr.bf16.mxu0 0
      %1313 = vmatpush1.bf16.xpose.msra.mxu0 0
      %1314 = vmatprep.subr.bf16.mxu0 0
      %1315 = vmatpush1.bf16.xpose.msra.mxu0 0
      %1316 = vmatprep.subr.bf16.mxu0 0
      %1317 = vmatpush1.bf16.xpose.msra.mxu0 0
      %1318 = vmatprep.subr.bf16.mxu0 0
      %1319 = vmatpush1.bf16.xpose.msra.mxu0 0
      %1320 = vmatprep.subr.bf16.mxu0 0
      %1321 = vmatpush1.bf16.xpose.msra.mxu0 0
      %1322 = vmatprep.mubr.bf16.mxu0 0
      %1323 = vmatmul.mubr.bf16.gmra.mrb[0].mxu0 %v1276
      %v1324 = vpop.f32.mrb[0].mxu0
      %v1325 = vadd.f32 0.0, %v1324
      %v1326 = vpop.f32.mrb[0].mxu0
      %v1327 = vpop.f32.mrb[0].mxu0
      %v1328 = vadd.f32 0.0, %v1327
      %v1329 = vpop.f32.mrb[0].mxu0
      %1330 = vmatprep.mubr.bf16.mxu0 0
      %1331 = vmatmul.mubr.bf16.gmra.mrb[0].mxu0 %v1279
      %v1332 = vpop.f32.mrb[0].mxu0
      %v1333 = vadd.f32 0.0, %v1332
      %v1334 = vpop.f32.mrb[0].mxu0
      %v1335 = vpop.f32.mrb[0].mxu0
      %v1336 = vpop.f32.mrb[0].mxu0
      %1337 = vdwg.mxu0
      %v1338 = vsel %vm671, %v1325, -1e+30
      %v1339 = vsel %vm671, %v1328, -1e+30
      %v1340 = vsel %vm671, %v1333, -1e+30
      %1341 = vmax.xlane.f32.xlu0 %v1338
      %v1342 = vpop.xlane.xlu0 %1341
      %1343 = vmax.xlane.f32.xlu0 %v1339
      %v1344 = vpop.xlane.xlu0 %1343
      %1345 = vmax.xlane.f32.xlu0 %v1340
      %v1346 = vpop.xlane.xlu0 %1345
      %v1347 = vsub.f32 %v1338, %v1342
      %v1348 = vsub.f32 %v1339, %v1344
      %v1349 = vsub.f32 %v1340, %v1346
      %v1350 = vmul.f32 %v1347, 1.442695
      %v1351 = vpow.pop %v1350
      %v1352 = vmul.f32 %v1348, 1.442695
      %v1353 = vpow.pop %v1352
      %v1354 = vmul.f32 %v1349, 1.442695
      %v1355 = vpow.pop %v1354
      %1356 = vadd.xlane.f32.xlu0 %v1351
      %v1357 = vpop.xlane.xlu0 %1356
      %1358 = vadd.xlane.f32.xlu0 %v1353
      %v1359 = vpop.xlane.xlu0 %1358
      %1360 = vadd.xlane.f32.xlu0 %v1355
      %v1361 = vpop.xlane.xlu0 %1360
      %v1362 = vrcp.pop %v1357
      %v1363 = vrcp.pop %v1359
      %v1364 = vrcp.pop %v1361
      %v1365 = vmul.f32 %v1351, %v1362
      %v1366 = vmul.f32 %v1353, %v1363
      %v1367 = vmul.f32 %v1355, %v1364
      %v1368 = vpack.c.bf16 %v1366, %v1365
      %v1369 = vpack.c.bf16 %v1367, %v1367
      %1370 = vrot.lane.b32.xlu0 %v592, 104
      %v1371 = vpop.permute.xlu0 %1370
      %1372 = vrot.lane.b32.xlu0 %v606, 104
      %v1373 = vpop.permute.xlu0 %1372
      %1377 = vmatprep.subr.bf16.mxu0 0
      %1378 = vmatpush1.bf16.msra.mxu0 %v1371
      %1379 = vmatprep.subr.bf16.mxu0 0
      %1380 = vmatpush1.bf16.msra.mxu0 %v1373
      %1381 = vmatprep.subr.bf16.mxu0 0
      %1382 = vmatpush1.bf16.msra.mxu0 %v1274
      %1383 = vmatprep.subr.bf16.mxu0 0
      %1384 = vmatpush1.bf16.msra.mxu0 %v1274
      %1385 = vmatprep.subr.bf16.mxu0 0
      %1386 = vmatpush1.bf16.msra.mxu0 %v1274
      %1387 = vmatprep.subr.bf16.mxu0 0
      %1388 = vmatpush1.bf16.msra.mxu0 %v1274
      %1389 = vmatprep.subr.bf16.mxu0 0
      %1390 = vmatpush1.bf16.msra.mxu0 %v1274
      %1391 = vmatprep.subr.bf16.mxu0 0
      %1392 = vmatpush1.bf16.msra.mxu0 %v1274
      %1393 = vmatprep.subr.bf16.mxu0 0
      %1394 = vmatpush1.bf16.msra.mxu0 0
      %1395 = vmatprep.subr.bf16.mxu0 0
      %1396 = vmatpush1.bf16.msra.mxu0 0
      %1397 = vmatprep.subr.bf16.mxu0 0
      %1398 = vmatpush1.bf16.msra.mxu0 0
      %1399 = vmatprep.subr.bf16.mxu0 0
      %1400 = vmatpush1.bf16.msra.mxu0 0
      %1401 = vmatprep.subr.bf16.mxu0 0
      %1402 = vmatpush1.bf16.msra.mxu0 0
      %1403 = vmatprep.subr.bf16.mxu0 0
      %1404 = vmatpush1.bf16.msra.mxu0 0
      %1405 = vmatprep.subr.bf16.mxu0 0
      %1406 = vmatpush1.bf16.msra.mxu0 0
      %1407 = vmatprep.subr.bf16.mxu0 0
      %1408 = vmatpush1.bf16.msra.mxu0 0
      %1409 = vmatprep.mubr.bf16.mxu0 0
      %1410 = vmatmul.mubr.bf16.gmra.mrb[0].mxu0 %v1368
      %v1411 = vpop.f32.mrb[0].mxu0
      %v1412 = vadd.f32 0.0, %v1411
      %v1413 = vpop.f32.mrb[0].mxu0
      %v1414 = vpop.f32.mrb[0].mxu0
      %v1415 = vadd.f32 0.0, %v1414
      %v1416 = vpop.f32.mrb[0].mxu0
      %1417 = vmatprep.mubr.bf16.mxu0 0
      %1418 = vmatmul.mubr.bf16.gmra.mrb[0].mxu0 %v1369
      %v1419 = vpop.f32.mrb[0].mxu0
      %v1420 = vadd.f32 0.0, %v1419
      %v1421 = vpop.f32.mrb[0].mxu0
      %v1422 = vpop.f32.mrb[0].mxu0
      %v1423 = vpop.f32.mrb[0].mxu0
      %1424 = vdwg.mxu0
      %v1425 = vpack.c.bf16 %v1415, %v1412
      %v1426 = vpack.c.bf16 %v1420, %v1420
      %v1428 = vsel %vm608, %v1425, 0
      %v1431 = vsel %vm608, %v1426, 0
      %v1434 = vsel %vm601, %v597, 0
      %1436 = vmatprep.subr.bf16.mxu0 0
      %1437 = vmatpush1.bf16.msra.mxu0 %v1434
      %1438 = vmatprep.subr.bf16.mxu0 0
      %1439 = vmatpush1.bf16.msra.mxu0 0
      %1440 = vmatprep.subr.bf16.mxu0 0
      %1441 = vmatpush1.bf16.msra.mxu0 0
      %1442 = vmatprep.subr.bf16.mxu0 0
      %1443 = vmatpush1.bf16.msra.mxu0 0
      %1444 = vmatprep.subr.bf16.mxu0 0
      %1445 = vmatpush1.bf16.msra.mxu0 0
      %1446 = vmatprep.subr.bf16.mxu0 0
      %1447 = vmatpush1.bf16.msra.mxu0 0
      %1448 = vmatprep.subr.bf16.mxu0 0
      %1449 = vmatpush1.bf16.msra.mxu0 0
      %1450 = vmatprep.subr.bf16.mxu0 0
      %1451 = vmatpush1.bf16.msra.mxu0 0
      %1452 = vmatprep.subr.bf16.mxu0 0
      %1453 = vmatpush1.bf16.msra.mxu0 0
      %1454 = vmatprep.subr.bf16.mxu0 0
      %1455 = vmatpush1.bf16.msra.mxu0 0
      %1456 = vmatprep.subr.bf16.mxu0 0
      %1457 = vmatpush1.bf16.msra.mxu0 0
      %1458 = vmatprep.subr.bf16.mxu0 0
      %1459 = vmatpush1.bf16.msra.mxu0 0
      %1460 = vmatprep.subr.bf16.mxu0 0
      %1461 = vmatpush1.bf16.msra.mxu0 0
      %1462 = vmatprep.subr.bf16.mxu0 0
      %1463 = vmatpush1.bf16.msra.mxu0 0
      %1464 = vmatprep.subr.bf16.mxu0 0
      %1465 = vmatpush1.bf16.msra.mxu0 0
      %1466 = vmatprep.subr.bf16.mxu0 0
      %1467 = vmatpush1.bf16.msra.mxu0 0
      %1468 = vmatprep.mubr.bf16.mxu0 0
      %1469 = vmatmul.mubr.bf16.gmra.mrb[0].mxu0 %v1428
      %v1470 = vpop.f32.mrb[0].mxu0
      %v1471 = vadd.f32 0.0, %v1470
      %v1472 = vpop.f32.mrb[0].mxu0
      %v1473 = vpop.f32.mrb[0].mxu0
      %v1474 = vadd.f32 0.0, %v1473
      %v1475 = vpop.f32.mrb[0].mxu0
      %1476 = vmatprep.mubr.bf16.mxu0 0
      %1477 = vmatmul.mubr.bf16.gmra.mrb[0].mxu0 %v1431
      %v1478 = vpop.f32.mrb[0].mxu0
      %v1479 = vadd.f32 0.0, %v1478
      %v1480 = vpop.f32.mrb[0].mxu0
      %v1481 = vpop.f32.mrb[0].mxu0
      %v1482 = vpop.f32.mrb[0].mxu0
      %1483 = vdwg.mxu0
      %v1484 = vadd.f32 %v1262, %v1471
      %v1485 = vadd.f32 %v1263, %v1474
      %v1486 = vadd.f32 %v1264, %v1479
      %v1487 = vld [vmem:[%s6] sm:$0x1]
      %v1488 = vsel %vm338, %v1484, 0.0
      %1489 = vadd.xlane.f32.xlu0 %v1488
      %v1490 = vpop.xlane.xlu0 %1489
      %v1491 = vsel %vm338, %v1485, 0.0
      %1492 = vadd.xlane.f32.xlu0 %v1491
      %v1493 = vpop.xlane.xlu0 %1492
      %v1494 = vsel %vm338, %v1486, 0.0
      %1495 = vadd.xlane.f32.xlu0 %v1494
      %v1496 = vpop.xlane.xlu0 %1495
      %v1497 = vmul.f32 %v1490, %v348
      %v1498 = vmul.f32 %v1493, %v348
      %v1499 = vmul.f32 %v1496, %v348
      %v1500 = vsub.f32 %v1484, %v1497
      %v1501 = vsub.f32 %v1485, %v1498
      %v1502 = vsub.f32 %v1486, %v1499
      %v1503 = vmul.f32 %v1500, %v1500
      %v1504 = vmul.f32 %v1501, %v1501
      %v1505 = vmul.f32 %v1502, %v1502
      %v1506 = vsel %vm338, %v1503, 0.0
      %1507 = vadd.xlane.f32.xlu0 %v1506
      %v1508 = vpop.xlane.xlu0 %1507
      %v1509 = vsel %vm338, %v1504, 0.0
      %1510 = vadd.xlane.f32.xlu0 %v1509
      %v1511 = vpop.xlane.xlu0 %1510
      %v1512 = vsel %vm338, %v1505, 0.0
      %1513 = vadd.xlane.f32.xlu0 %v1512
      %v1514 = vpop.xlane.xlu0 %1513
      %v1515 = vmul.f32 %v1508, %v348
      %v1516 = vmul.f32 %v1511, %v348
      %v1517 = vmul.f32 %v1514, %v348
      %v1518 = vadd.f32 %v1515, 1e-05
      %v1519 = vadd.f32 %v1516, 1e-05
      %v1520 = vadd.f32 %v1517, 1e-05
      %v1521 = vrsqrt.pop %v1518
      %v1522 = vrsqrt.pop %v1519
      %v1523 = vrsqrt.pop %v1520
      %v1524 = vmul.f32 %v1500, %v1521
      %v1525 = vmul.f32 %v1501, %v1522
      %v1526 = vmul.f32 %v1502, %v1523
      %v1528 = vlaneseq
      %v1529 = vshrl.u32 %v1528, 7
      %v1530 = vsub.s32 0, %v1529
      %v1531 = vrot.slane %v1487, %v1530
      %v1533 = vmul.f32 %v1524, %v1531
      %v1534 = vmul.f32 %v1525, %v1531
      %v1535 = vmul.f32 %v1526, %v1531
      %v1536 = vpack.c.bf16 %v1534, %v1533
      %v1537 = vpack.c.bf16 %v1535, %v1535
      %v1538 = vld [vmem:[%s7] sm:$0xf]
      %v1539 = vld [vmem:[%s7 + $0x4] sm:$0xf]
      %v1540 = vld [vmem:[%s7 + $0x8] sm:$0xf]
      %v1541 = vld [vmem:[%s7 + $0xc] sm:$0xf]
      %v1546 = vunpack.c.l.b16 %v1538
      %v1547 = vunpack.c.l.b16 %v1539
      %v1548 = vunpack.c.l.b16 %v1540
      %v1549 = vunpack.c.l.b16 %v1541
      %v1550 = vpack.c.b16 %v1547, %v1546
      %v1551 = vpack.c.b16 %v1549, %v1548
      %v1555 = vsel %vm338, %v1536, 0
      %v1558 = vsel %vm338, %v1537, 0
      %1560 = vmatprep.subr.bf16.mxu0 0
      %1561 = vmatpush1.bf16.msra.mxu0 %v1550
      %1562 = vmatprep.subr.bf16.mxu0 0
      %1563 = vmatpush1.bf16.msra.mxu0 %v1551
      %1564 = vmatprep.subr.bf16.mxu0 0
      %1565 = vmatpush1.bf16.msra.mxu0 0
      %1566 = vmatprep.subr.bf16.mxu0 0
      %1567 = vmatpush1.bf16.msra.mxu0 0
      %1568 = vmatprep.subr.bf16.mxu0 0
      %1569 = vmatpush1.bf16.msra.mxu0 0
      %1570 = vmatprep.subr.bf16.mxu0 0
      %1571 = vmatpush1.bf16.msra.mxu0 0
      %1572 = vmatprep.subr.bf16.mxu0 0
      %1573 = vmatpush1.bf16.msra.mxu0 0
      %1574 = vmatprep.subr.bf16.mxu0 0
      %1575 = vmatpush1.bf16.msra.mxu0 0
      %1576 = vmatprep.subr.bf16.mxu0 0
      %1577 = vmatpush1.bf16.msra.mxu0 0
      %1578 = vmatprep.subr.bf16.mxu0 0
      %1579 = vmatpush1.bf16.msra.mxu0 0
      %1580 = vmatprep.subr.bf16.mxu0 0
      %1581 = vmatpush1.bf16.msra.mxu0 0
      %1582 = vmatprep.subr.bf16.mxu0 0
      %1583 = vmatpush1.bf16.msra.mxu0 0
      %1584 = vmatprep.subr.bf16.mxu0 0
      %1585 = vmatpush1.bf16.msra.mxu0 0
      %1586 = vmatprep.subr.bf16.mxu0 0
      %1587 = vmatpush1.bf16.msra.mxu0 0
      %1588 = vmatprep.subr.bf16.mxu0 0
      %1589 = vmatpush1.bf16.msra.mxu0 0
      %1590 = vmatprep.subr.bf16.mxu0 0
      %1591 = vmatpush1.bf16.msra.mxu0 0
      %1592 = vmatprep.mubr.bf16.mxu0 0
      %1593 = vmatmul.mubr.bf16.gmra.mrb[0].mxu0 %v1555
      %v1594 = vpop.f32.mrb[0].mxu0
      %v1595 = vadd.f32 0.0, %v1594
      %v1596 = vpop.f32.mrb[0].mxu0
      %v1597 = vpop.f32.mrb[0].mxu0
      %v1598 = vadd.f32 0.0, %v1597
      %v1599 = vpop.f32.mrb[0].mxu0
      %1600 = vmatprep.mubr.bf16.mxu0 0
      %1601 = vmatmul.mubr.bf16.gmra.mrb[0].mxu0 %v1558
      %v1602 = vpop.f32.mrb[0].mxu0
      %v1603 = vadd.f32 0.0, %v1602
      %v1604 = vpop.f32.mrb[0].mxu0
      %v1605 = vpop.f32.mrb[0].mxu0
      %v1606 = vpop.f32.mrb[0].mxu0
      %1607 = vdwg.mxu0
      %v1608 = vmul.f32 %v1595, %v1595
      %v1609 = vmul.f32 %v1598, %v1598
      %v1610 = vmul.f32 %v1603, %v1603
      %v1611 = vmul.f32 %v1595, %v1608
      %v1612 = vmul.f32 %v1598, %v1609
      %v1613 = vmul.f32 %v1603, %v1610
      %v1614 = vmul.f32 %v1611, 0.044715
      %v1615 = vmul.f32 %v1612, 0.044715
      %v1616 = vmul.f32 %v1613, 0.044715
      %v1617 = vadd.f32 %v1595, %v1614
      %v1618 = vadd.f32 %v1598, %v1615
      %v1619 = vadd.f32 %v1603, %v1616
      %v1620 = vmul.f32 %v1617, 0.7978846
      %v1621 = vmul.f32 %v1618, 0.7978846
      %v1622 = vmul.f32 %v1619, 0.7978846
      %v1623 = vtanh.pop %v1620
      %v1624 = vtanh.pop %v1621
      %v1625 = vtanh.pop %v1622
      %v1626 = vadd.f32 %v1623, 1.0
      %v1627 = vadd.f32 %v1624, 1.0
      %v1628 = vadd.f32 %v1625, 1.0
      %v1629 = vmul.f32 %v1626, 0.5
      %v1630 = vmul.f32 %v1627, 0.5
      %v1631 = vmul.f32 %v1628, 0.5
      %v1632 = vmul.f32 %v1595, %v1629
      %v1633 = vmul.f32 %v1598, %v1630
      %v1634 = vmul.f32 %v1603, %v1631
      %v1635 = vpack.c.bf16 %v1633, %v1632
      %v1636 = vpack.c.bf16 %v1634, %v1634
      %v1637 = vld [vmem:[%s8] sm:$0xf]
      %v1638 = vld [vmem:[%s8 + $0x4] sm:$0xf]
      %v1639 = vld [vmem:[%s8 + $0x8] sm:$0xf]
      %v1640 = vld [vmem:[%s8 + $0xc] sm:$0xf]
      %v1641 = vld [vmem:[%s8 + $0x10] sm:$0xf]
      %v1642 = vld [vmem:[%s8 + $0x14] sm:$0xf]
      %v1643 = vld [vmem:[%s8 + $0x18] sm:$0xf]
      %v1644 = vld [vmem:[%s8 + $0x1c] sm:$0xf]
      %v1645 = vld [vmem:[%s8 + $0x20] sm:$0xf]
      %v1646 = vld [vmem:[%s8 + $0x24] sm:$0xf]
      %v1647 = vld [vmem:[%s8 + $0x28] sm:$0xf]
      %v1648 = vld [vmem:[%s8 + $0x2c] sm:$0xf]
      %v1649 = vld [vmem:[%s8 + $0x30] sm:$0xf]
      %v1650 = vld [vmem:[%s8 + $0x34] sm:$0xf]
      %v1651 = vld [vmem:[%s8 + $0x38] sm:$0xf]
      %v1652 = vld [vmem:[%s8 + $0x3c] sm:$0xf]
      %v1669 = vunpack.c.l.b16 %v1637
      %v1670 = vunpack.c.l.b16 %v1638
      %v1671 = vunpack.c.l.b16 %v1639
      %v1672 = vunpack.c.l.b16 %v1640
      %v1673 = vunpack.c.l.b16 %v1641
      %v1674 = vunpack.c.l.b16 %v1642
      %v1675 = vunpack.c.l.b16 %v1643
      %v1676 = vunpack.c.l.b16 %v1644
      %v1677 = vunpack.c.l.b16 %v1645
      %v1678 = vunpack.c.l.b16 %v1646
      %v1679 = vunpack.c.l.b16 %v1647
      %v1680 = vunpack.c.l.b16 %v1648
      %v1681 = vunpack.c.l.b16 %v1649
      %v1682 = vunpack.c.l.b16 %v1650
      %v1683 = vunpack.c.l.b16 %v1651
      %v1684 = vunpack.c.l.b16 %v1652
      %v1685 = vpack.c.b16 %v1670, %v1669
      %v1686 = vpack.c.b16 %v1672, %v1671
      %v1687 = vpack.c.b16 %v1674, %v1673
      %v1688 = vpack.c.b16 %v1676, %v1675
      %v1689 = vpack.c.b16 %v1678, %v1677
      %v1690 = vpack.c.b16 %v1680, %v1679
      %v1691 = vpack.c.b16 %v1682, %v1681
      %v1692 = vpack.c.b16 %v1684, %v1683
      %1701 = vmatprep.subr.bf16.mxu0 0
      %1702 = vmatpush1.bf16.msra.mxu0 %v1685
      %1703 = vmatprep.subr.bf16.mxu0 0
      %1704 = vmatpush1.bf16.msra.mxu0 %v1686
      %1705 = vmatprep.subr.bf16.mxu0 0
      %1706 = vmatpush1.bf16.msra.mxu0 %v1687
      %1707 = vmatprep.subr.bf16.mxu0 0
      %1708 = vmatpush1.bf16.msra.mxu0 %v1688
      %1709 = vmatprep.subr.bf16.mxu0 0
      %1710 = vmatpush1.bf16.msra.mxu0 %v1689
      %1711 = vmatprep.subr.bf16.mxu0 0
      %1712 = vmatpush1.bf16.msra.mxu0 %v1690
      %1713 = vmatprep.subr.bf16.mxu0 0
      %1714 = vmatpush1.bf16.msra.mxu0 %v1691
      %1715 = vmatprep.subr.bf16.mxu0 0
      %1716 = vmatpush1.bf16.msra.mxu0 %v1692
      %1717 = vmatprep.subr.bf16.mxu0 0
      %1718 = vmatpush1.bf16.msra.mxu0 0
      %1719 = vmatprep.subr.bf16.mxu0 0
      %1720 = vmatpush1.bf16.msra.mxu0 0
      %1721 = vmatprep.subr.bf16.mxu0 0
      %1722 = vmatpush1.bf16.msra.mxu0 0
      %1723 = vmatprep.subr.bf16.mxu0 0
      %1724 = vmatpush1.bf16.msra.mxu0 0
      %1725 = vmatprep.subr.bf16.mxu0 0
      %1726 = vmatpush1.bf16.msra.mxu0 0
      %1727 = vmatprep.subr.bf16.mxu0 0
      %1728 = vmatpush1.bf16.msra.mxu0 0
      %1729 = vmatprep.subr.bf16.mxu0 0
      %1730 = vmatpush1.bf16.msra.mxu0 0
      %1731 = vmatprep.subr.bf16.mxu0 0
      %1732 = vmatpush1.bf16.msra.mxu0 0
      %1733 = vmatprep.mubr.bf16.mxu0 0
      %1734 = vmatmul.mubr.bf16.gmra.mrb[0].mxu0 %v1635
      %v1735 = vpop.f32.mrb[0].mxu0
      %v1736 = vadd.f32 0.0, %v1735
      %v1737 = vpop.f32.mrb[0].mxu0
      %v1738 = vpop.f32.mrb[0].mxu0
      %v1739 = vadd.f32 0.0, %v1738
      %v1740 = vpop.f32.mrb[0].mxu0
      %1741 = vmatprep.mubr.bf16.mxu0 0
      %1742 = vmatmul.mubr.bf16.gmra.mrb[0].mxu0 %v1636
      %v1743 = vpop.f32.mrb[0].mxu0
      %v1744 = vadd.f32 0.0, %v1743
      %v1745 = vpop.f32.mrb[0].mxu0
      %v1746 = vpop.f32.mrb[0].mxu0
      %v1747 = vpop.f32.mrb[0].mxu0
      %1748 = vdwg.mxu0
      %v1749 = vadd.f32 %v1484, %v1736
      %v1750 = vadd.f32 %v1485, %v1739
      %v1751 = vadd.f32 %v1486, %v1744
      %1752 = vst.msk [vmem:[%s332] sm:$0xff] %vm338, %v1749
      %1753 = vst.msk [vmem:[%s332 + $0x8] sm:$0xff] %vm338, %v1750
      %1754 = vst.msk [vmem:[%s332 + $0x10] sm:$0xff] %vm338, %v1751
      %p1755 = scmp.lt.s32.totalorder %s20, 1
      %s1756 = scalar_select %p1755, %s20, 1
      %s1757 = smul.addr %s1756, 3
      %s1758 = smul.addr %s1757, 8
      %s1759 = scalar_lea.vmem %s9, %s1758
      // Predicated region
      $region57: #{encoder_forward.4} parent=55 // pred_check
        %p1760 = pneg %p232
      $region58: #{encoder_forward.4} parent=55 // pred_check_branch
        %1762 = sbr.rel (%p1760) target = $region60
      $region59: #{encoder_forward.4} parent=55 // pred_region
        _
      $region60: #{encoder_forward.4} parent=55 // pred_fallthru
        _
    $region56: #{encoder_forward.4} parent=5 // pred_fallthru
      _
    %p1763 = scmp.le.s32.totalorder 2, %s15
    // Predicated region
    $region61: #{encoder_forward.4} parent=5 // pred_check
      %p1764 = pneg %p1763
    $region62: #{encoder_forward.4} parent=5 // pred_check_branch
      %1766 = sbr.rel (%p1764) target = $region64
    $region63: #{encoder_forward.4} parent=5 // pred_region
      %s1767 = ssub.s32 %s15, 2
      // Predicated region
      $region65: #{encoder_forward.4} parent=63 // pred_check
        %p1768 = pneg %p238
      $region66: #{encoder_forward.4} parent=63 // pred_check_branch
        %1770 = sbr.rel (%p1768) target = $region68
      $region67: #{encoder_forward.4} parent=63 // pred_region
        %p1771 = scmp.lt.s32.totalorder %s21, 1
        %s1772 = scalar_select %p1771, %s21, 1
        %s1773 = smul.addr %s1772, 3
        %s1774 = smul.addr %s1773, 8
        %s1775 = scalar_lea.vmem %s9, %s1774
      $region68: #{encoder_forward.4} parent=63 // pred_fallthru
        _
    $region64: #{encoder_forward.4} parent=5 // pred_fallthru
      _
  $region6: #{encoder_forward.4} parent=0 // loop_footer
    %s19 = sadd.s32 1, %s15
  $region7: #{encoder_forward.4} parent=0 // loop_footer_branch
    %14 = sbr.rel target = $region3
  $region8: #{encoder_forward.4} parent=0 // loop_exit
    _

</llo_original>
